<compile_context>
chip_gen: v7x
topology: tpu7x:2x2x1
jax: 0.10.0
libtpu: 0.0.40
codegen_flags: <defaults>
</compile_context>

<pallas_src>
import functools

import jax
import jax.numpy as jnp
import numpy as np
from jax.experimental import pallas as pl
from jax.experimental.pallas import tpu as pltpu

_C0 = 0.5
_C1 = 0.044715
_C2 = 0.7978845608028654
_LANE = 128


def _round_up(x, m):
    return (x + m - 1) // m * m


# ----------------------- dense ConvTranspose2d operator ----------------------

def convT_dense_operator(w, H, W, *, stride, padding, dilation):
    """Dense (Cin*H*W, Cout*Ho*Wo) matrix of a PyTorch ConvTranspose2d (no bias).

    out[n, co, oh, ow] = sum_{ci,h,w,kh,kw} x[n,ci,h,w] * w[ci,co,kh,kw]
                         * [oh == h*stride + kh*dilation - padding]
                         * [ow == w*stride + kw*dilation - padding]
    Built once at init from the weights (numpy, host side).
    """
    w = np.asarray(w, np.float32)
    Cin, Cout, KH, KW = w.shape
    Ho = (H - 1) * stride - 2 * padding + dilation * (KH - 1) + 1
    Wo = (W - 1) * stride - 2 * padding + dilation * (KW - 1) + 1

    def axis_map(In, Out, K):
        i = np.arange(In)[:, None]               # input position
        o = np.arange(Out)[None, :]              # output position
        num = o + padding - i * stride           # must equal k*dilation
        k = num // dilation
        valid = (num % dilation == 0) & (k >= 0) & (k < K)
        return np.clip(k, 0, K - 1), valid       # (In, Out)

    kh, vh = axis_map(H, Ho, KH)
    kw, vw = axis_map(W, Wo, KW)
    # B[ci, co, h, oh, w, ow] = w[ci, co, kh[h,oh], kw[w,ow]] * valid
    B = w[:, :, kh[:, :, None, None], kw[None, None, :, :]]   # (Cin,Cout,H,Ho,W,Wo)
    B = B * (vh[:, :, None, None] & vw[None, None, :, :])
    B = B.transpose(0, 2, 4, 1, 3, 5).reshape(Cin * H * W, Cout * Ho * Wo)
    return B, (Ho, Wo)


# --------------------------- single fused kernel ------------------------------

def _fused_forward_kernel(lhs_ref, bcat_ref, o_ref, *, n):
    # One MXU matmul covers all three transposed convolutions:
    #   (3n, Kpad) block-diagonal LHS  @  (Kpad, Mpad) stacked operator.
    prod = jnp.dot(lhs_ref[...], bcat_ref[...], preferred_element_type=jnp.float32)
    v1 = prod[0:n]            # conv1(x1) flattened  (n, Mpad)
    v10 = prod[n:2 * n]       # conv3(x2) flattened
    v23 = prod[2 * n:3 * n]   # conv4(x3) flattened

    def gelu_tanh(v):
        return (v * _C0) * (jnp.tanh((v + _C1 * v * v * v) * _C2) + 1.0)

    v2 = v1 * _C0                                                  # v2
    v22 = jnp.tanh((gelu_tanh(v1) + gelu_tanh(v10)) * _C2) + 1.0   # v9+v18 -> v22
    v35 = jnp.tanh((gelu_tanh(v23) + v22) * _C2) + 1.0             # v31+v22 -> v35
    o_ref[...] = v2 * v35                                          # v36


# --------------------------------- model -------------------------------------

class PallasModel:
    def __init__(self, key, x1_hw=(13, 13), x2_hw=(11, 11), x3_hw=(2, 2), cout=2):
        k1, k3, k4 = jax.random.split(key, 3)
        self.cout = cout
        # conv1: ConvTranspose2d(1, 2, 1, stride=2, padding=2, dilation=2)
        self.w1 = jax.random.normal(k1, (1, cout, 1, 1), jnp.float32) * 0.5
        # conv3: ConvTranspose2d(6, ., 11)   (out_channels unified -> cout)
        self.w3 = jax.random.normal(k3, (6, cout, 11, 11), jnp.float32) * 0.05
        # conv4: ConvTranspose2d(15, ., 20)  (out_channels unified -> cout)
        self.w4 = jax.random.normal(k4, (15, cout, 20, 20), jnp.float32) * 0.02

        # Precompute dense linear operators once (weight preprocessing).
        B1, (Ho, Wo) = convT_dense_operator(self.w1, *x1_hw,
                                            stride=2, padding=2, dilation=2)
        B3, hw3 = convT_dense_operator(self.w3, *x2_hw,
                                       stride=1, padding=0, dilation=1)
        B4, hw4 = convT_dense_operator(self.w4, *x3_hw,
                                       stride=1, padding=0, dilation=1)
        assert hw3 == (Ho, Wo) and hw4 == (Ho, Wo)
        self.Ho, self.Wo = Ho, Wo
        self.M = cout * Ho * Wo                 # 882
        self.Mpad = _round_up(self.M, _LANE)    # 896 (lane-dense, unmasked stores)

        # Column offsets of each x-block inside the block-diagonal LHS.
        self.k_sizes = (B1.shape[0], B3.shape[0], B4.shape[0])    # (169, 726, 60)
        self.k_offs = (0, B1.shape[0], B1.shape[0] + B3.shape[0])
        K = sum(self.k_sizes)                   # 955
        self.Kpad = _round_up(K, 8)             # 960

        # Stacked operator, padded once on the host (zeros in pad rows/cols).
        B_cat = np.zeros((self.Kpad, self.Mpad), np.float32)
        B_cat[:K, :self.M] = np.concatenate([B1, B3, B4], axis=0)
        self.B_cat = jnp.asarray(B_cat)         # ~3.4 MB, single VMEM buffer

    def __call__(self, x1, x2, x3):
        N = x1.shape[0]
        x1f = x1.reshape(N, -1).astype(jnp.float32)   # (N, 169)
        x2f = x2.reshape(N, -1).astype(jnp.float32)   # (N, 726)
        x3f = x3.reshape(N, -1).astype(jnp.float32)   # (N, 60)

        # Block-diagonal LHS (layout plumbing, ~23 KB) built in the wrapper so
        # the kernel is a single clean matmul + elementwise chain.
        o1, o2, o3 = self.k_offs
        lhs = jnp.zeros((3 * N, self.Kpad), jnp.float32)
        lhs = lhs.at[0:N, o1:o1 + x1f.shape[1]].set(x1f)
        lhs = lhs.at[N:2 * N, o2:o2 + x2f.shape[1]].set(x2f)
        lhs = lhs.at[2 * N:3 * N, o3:o3 + x3f.shape[1]].set(x3f)

        cost = pl.CostEstimate(
            flops=2 * (3 * N) * self.Kpad * self.Mpad,
            transcendentals=5 * N * self.Mpad,
            bytes_accessed=4 * (3 * N * self.Kpad
                                + self.Kpad * self.Mpad
                                + N * self.Mpad),
        )
        out = pl.pallas_call(
            functools.partial(_fused_forward_kernel, n=N),
            out_shape=jax.ShapeDtypeStruct((N, self.Mpad), jnp.float32),
            # Gridless call + whole-array VMEM specs: single buffer per operand,
            # no pipeline machinery, everything resident in VMEM (~3.5 MB total).
            in_specs=[pl.BlockSpec(memory_space=pltpu.MemorySpace.VMEM),
                      pl.BlockSpec(memory_space=pltpu.MemorySpace.VMEM)],
            out_specs=pl.BlockSpec(memory_space=pltpu.MemorySpace.VMEM),
            cost_estimate=cost,
        )(lhs, self.B_cat)
        # Slice off the 14 zero pad columns outside the kernel.
        return out[:, :self.M].reshape(N, self.cout, self.Ho, self.Wo)


# ----------------------------- pure-JAX reference ----------------------------

def _conv_transpose_ref(x, w, stride, padding, dilation):
    N, Cin, H, W = x.shape
    _, Cout, KH, KW = w.shape
    Hf = (H - 1) * stride + dilation * (KH - 1) + 1
    Wf = (W - 1) * stride + dilation * (KW - 1) + 1
    canvas = jnp.zeros((N, Cout, Hf, Wf), x.dtype)
    for kh in range(KH):
        for kw in range(KW):
            contrib = jnp.einsum('nchw,cd->ndhw', x, w[:, :, kh, kw])
            canvas = canvas.at[:, :,
                               kh * dilation:kh * dilation + (H - 1) * stride + 1:stride,
                               kw * dilation:kw * dilation + (W - 1) * stride + 1:stride
                               ].add(contrib)
    return canvas[:, :, padding:Hf - padding, padding:Wf - padding]


def _forward_ref(x1, x2, x3, w1, w3, w4):
    def g(v):
        return (v * _C0) * (jnp.tanh((v + _C1 * v ** 3) * _C2) + 1.0)
    v1 = _conv_transpose_ref(x1, w1, 2, 2, 2)
    v10 = _conv_transpose_ref(x2, w3, 1, 0, 1)
    v23 = _conv_transpose_ref(x3, w4, 1, 0, 1)
    v2 = v1 * _C0
    v22 = jnp.tanh((g(v1) + g(v10)) * _C2) + 1.0
    v35 = jnp.tanh((g(v23) + v22) * _C2) + 1.0
    return v2 * v35


# ----------------------------------- main -------------------------------------

if __name__ == "__main__":
    key = jax.random.PRNGKey(0)
    kx1, kx2, kx3, kw = jax.random.split(key, 4)

    # Small shapes chosen so all three conv-transpose outputs are (2, 2, 21, 21):
    #   conv1: (13-1)*2 - 4 + 1 = 21 ; conv3: 11 + 10 = 21 ; conv4: 2 + 19 = 21
    x1 = jax.random.normal(kx1, (2, 1, 13, 13), jnp.float32)
    x2 = jax.random.normal(kx2, (2, 6, 11, 11), jnp.float32)
    x3 = jax.random.normal(kx3, (2, 15, 2, 2), jnp.float32)

    model = PallasModel(kw)
    fwd = jax.jit(model.__call__)
    out = fwd(x1, x2, x3)
    jax.block_until_ready(out)

    ref = _forward_ref(x1, x2, x3, model.w1, model.w3, model.w4)
    np.testing.assert_allclose(np.asarray(out), np.asarray(ref),
                               rtol=1e-4, atol=1e-4)
    print("KERNEL_OK")
</pallas_src>

<mosaic_0001>
module attributes {stable_mosaic.version = 11 : i64} {
  func.func @_fused_forward_kernel(%arg0: memref<6x960xf32, #tpu.memory_space<vmem>>, %arg1: memref<960x896xf32, #tpu.memory_space<vmem>>, %arg2: memref<2x896xf32, #tpu.memory_space<vmem>>) attributes {dimension_semantics = [], scalar_prefetch = 0 : i64, scratch_operands = 0 : i64, tpu.core_type = #tpu.core_type<tc>} {
    %c0 = arith.constant 0 : index
    %c0_0 = arith.constant 0 : index
    %0 = vector.load %arg0[%c0, %c0_0] : memref<6x960xf32, #tpu.memory_space<vmem>>, vector<6x960xf32>
    %c0_1 = arith.constant 0 : index
    %c0_2 = arith.constant 0 : index
    %1 = vector.load %arg1[%c0_1, %c0_2] : memref<960x896xf32, #tpu.memory_space<vmem>>, vector<960x896xf32>
    %cst = arith.constant dense<0.000000e+00> : vector<6x896xf32>
    %2 = tpu.matmul %0, %1, %cst {dimension_numbers = #tpu.dot_dimension_numbers<[1], [0], [0], [1], [0, 0, 1, 1], [], []>} : vector<6x960xf32>, vector<960x896xf32>, vector<6x896xf32> -> vector<6x896xf32>
    %3 = vector.extract_strided_slice %2 {offsets = [0, 0], sizes = [2, 896], strides = [1, 1]} : vector<6x896xf32> to vector<2x896xf32>
    %4 = vector.extract_strided_slice %2 {offsets = [2, 0], sizes = [2, 896], strides = [1, 1]} : vector<6x896xf32> to vector<2x896xf32>
    %5 = vector.extract_strided_slice %2 {offsets = [4, 0], sizes = [2, 896], strides = [1, 1]} : vector<6x896xf32> to vector<2x896xf32>
    %cst_3 = arith.constant 5.000000e-01 : f32
    %6 = vector.broadcast %cst_3 : f32 to vector<2x896xf32>
    %7 = arith.mulf %3, %6 : vector<2x896xf32>
    %cst_4 = arith.constant 5.000000e-01 : f32
    %8 = vector.broadcast %cst_4 : f32 to vector<2x896xf32>
    %9 = arith.mulf %3, %8 : vector<2x896xf32>
    %cst_5 = arith.constant 4.471500e-02 : f32
    %10 = vector.broadcast %cst_5 : f32 to vector<2x896xf32>
    %11 = arith.mulf %10, %3 : vector<2x896xf32>
    %12 = arith.mulf %11, %3 : vector<2x896xf32>
    %13 = arith.mulf %12, %3 : vector<2x896xf32>
    %14 = arith.addf %3, %13 : vector<2x896xf32>
    %cst_6 = arith.constant 0.797884583 : f32
    %15 = vector.broadcast %cst_6 : f32 to vector<2x896xf32>
    %16 = arith.mulf %14, %15 : vector<2x896xf32>
    %17 = math.tanh %16 : vector<2x896xf32>
    %cst_7 = arith.constant 1.000000e+00 : f32
    %18 = vector.broadcast %cst_7 : f32 to vector<2x896xf32>
    %19 = arith.addf %17, %18 : vector<2x896xf32>
    %20 = arith.mulf %9, %19 : vector<2x896xf32>
    %cst_8 = arith.constant 5.000000e-01 : f32
    %21 = vector.broadcast %cst_8 : f32 to vector<2x896xf32>
    %22 = arith.mulf %4, %21 : vector<2x896xf32>
    %cst_9 = arith.constant 4.471500e-02 : f32
    %23 = vector.broadcast %cst_9 : f32 to vector<2x896xf32>
    %24 = arith.mulf %23, %4 : vector<2x896xf32>
    %25 = arith.mulf %24, %4 : vector<2x896xf32>
    %26 = arith.mulf %25, %4 : vector<2x896xf32>
    %27 = arith.addf %4, %26 : vector<2x896xf32>
    %cst_10 = arith.constant 0.797884583 : f32
    %28 = vector.broadcast %cst_10 : f32 to vector<2x896xf32>
    %29 = arith.mulf %27, %28 : vector<2x896xf32>
    %30 = math.tanh %29 : vector<2x896xf32>
    %cst_11 = arith.constant 1.000000e+00 : f32
    %31 = vector.broadcast %cst_11 : f32 to vector<2x896xf32>
    %32 = arith.addf %30, %31 : vector<2x896xf32>
    %33 = arith.mulf %22, %32 : vector<2x896xf32>
    %34 = arith.addf %20, %33 : vector<2x896xf32>
    %cst_12 = arith.constant 0.797884583 : f32
    %35 = vector.broadcast %cst_12 : f32 to vector<2x896xf32>
    %36 = arith.mulf %34, %35 : vector<2x896xf32>
    %37 = math.tanh %36 : vector<2x896xf32>
    %cst_13 = arith.constant 1.000000e+00 : f32
    %38 = vector.broadcast %cst_13 : f32 to vector<2x896xf32>
    %39 = arith.addf %37, %38 : vector<2x896xf32>
    %cst_14 = arith.constant 5.000000e-01 : f32
    %40 = vector.broadcast %cst_14 : f32 to vector<2x896xf32>
    %41 = arith.mulf %5, %40 : vector<2x896xf32>
    %cst_15 = arith.constant 4.471500e-02 : f32
    %42 = vector.broadcast %cst_15 : f32 to vector<2x896xf32>
    %43 = arith.mulf %42, %5 : vector<2x896xf32>
    %44 = arith.mulf %43, %5 : vector<2x896xf32>
    %45 = arith.mulf %44, %5 : vector<2x896xf32>
    %46 = arith.addf %5, %45 : vector<2x896xf32>
    %cst_16 = arith.constant 0.797884583 : f32
    %47 = vector.broadcast %cst_16 : f32 to vector<2x896xf32>
    %48 = arith.mulf %46, %47 : vector<2x896xf32>
    %49 = math.tanh %48 : vector<2x896xf32>
    %cst_17 = arith.constant 1.000000e+00 : f32
    %50 = vector.broadcast %cst_17 : f32 to vector<2x896xf32>
    %51 = arith.addf %49, %50 : vector<2x896xf32>
    %52 = arith.mulf %41, %51 : vector<2x896xf32>
    %53 = arith.addf %52, %39 : vector<2x896xf32>
    %cst_18 = arith.constant 0.797884583 : f32
    %54 = vector.broadcast %cst_18 : f32 to vector<2x896xf32>
    %55 = arith.mulf %53, %54 : vector<2x896xf32>
    %56 = math.tanh %55 : vector<2x896xf32>
    %cst_19 = arith.constant 1.000000e+00 : f32
    %57 = vector.broadcast %cst_19 : f32 to vector<2x896xf32>
    %58 = arith.addf %56, %57 : vector<2x896xf32>
    %59 = arith.mulf %7, %58 : vector<2x896xf32>
    %c0_20 = arith.constant 0 : index
    %c0_21 = arith.constant 0 : index
    %60 = vector.load %arg2[%c0_20, %c0_21] : memref<2x896xf32, #tpu.memory_space<vmem>>, vector<2x896xf32>
    tpu.vector_store %arg2[%c0_20, %c0_21], %59 {strides = array<i32>} : memref<2x896xf32, #tpu.memory_space<vmem>>, vector<2x896xf32>,
    return
  }
}

</mosaic_0001>

<llo_original>
// kernel: a_call__.1
$region0: #{a_call__.1}
  #allocation0 [shape = 'u32[]', space=smem, size = 0x4, offset = 0x4, fixed_abs, tag = 'smem constant byte address 0x4 - core index']
  #allocation1 [shape = 'u32[144,128]{1,0:T(1,128)}', space=vmem, size = 0x12000, scoped, tag = 'internal scratch']
  %s0 = inlined_call_operand.vmem [shape: f32[6,960], index: 0, kind: input, shape index: {}]
  %s1 = inlined_call_operand.hbm [shape: f32[960,896], index: 1, kind: input, shape index: {}]
  %s2 = inlined_call_operand.vmem [shape: f32[2,896], index: 2, kind: output, shape index: {}]
  %s3 = sld [smem:[#allocation0]]
  $region22: #{a_call__.1} parent=0
    _
  %s5 = ssub.s32 1, %s3
  %s6 = scalar_select 0, %s5, %s3
  $region1: #{a_call__.1} parent=0
    #allocation2 [shape = 'u8[3440640]{0}', space=vmem, size = 0x348000, scoped, tag = 'input window, operand 1, single buffered']
    #allocation3 [shape = 's32[1]{0}', space=sflag, size = 0x4, scoped, tag = 'scoped memory for a_call__.1']
    %7 = vsyncpa [#allocation3], 0
    // Predicated region
    $region2: #{a_call__.1} parent=1 // pred_check
      _
    $region3: #{a_call__.1} parent=1 // pred_check_branch
      %9 = sbr.rel (0) target = $region5
    $region4: #{a_call__.1} parent=1 // pred_region
      _
    $region5: #{a_call__.1} parent=1 // pred_fallthru
      _
    // Predicated region
    $region6: #{a_call__.1} parent=1 // pred_check
      _
    $region7: #{a_call__.1} parent=1 // pred_check_branch
      %11 = sbr.rel (0) target = $region9
    $region8: #{a_call__.1} parent=1 // pred_region
      %s13 = ssub.s32 107520, 107520
      %14 = vsyncadd [#allocation3], %s13
      %s15 = sshll.u32 [#allocation2], 4
      %s16 = int_to_ptr.vmem [resolvable:$true] %s15
      %21 = dma.hbm_to_vmem [thread:$0]  %s1, 107520, %s16, [#allocation3], 896, 896, 56
    $region9: #{a_call__.1} parent=1 // pred_fallthru
      _
    // Predicated region
    $region10: #{a_call__.1} parent=1 // pred_check
      _
    $region11: #{a_call__.1} parent=1 // pred_check_branch
      %23 = sbr.rel (0) target = $region13
    $region12: #{a_call__.1} parent=1 // pred_region
      %24 = dma.done [#allocation3], 107520
    $region13: #{a_call__.1} parent=1 // pred_fallthru
      _
    %v25 = vld [vmem:[%s0] sm:$0x3f]
    %v26 = vld [vmem:[%s0 + $0x8] sm:$0x3f]
    %v27 = vld [vmem:[%s0 + $0x10] sm:$0x3f]
    %v28 = vld [vmem:[%s0 + $0x18] sm:$0x3f]
    %v29 = vld [vmem:[%s0 + $0x20] sm:$0x3f]
    %v30 = vld [vmem:[%s0 + $0x28] sm:$0x3f]
    %v31 = vld [vmem:[%s0 + $0x30] sm:$0x3f]
    %v32 = vld [vmem:[%s0 + $0x38] sm:$0x3f]
    %v33 = vld [vmem:[#allocation2] sm:$0xff]
    %v34 = vld [vmem:[#allocation2 + $0x8] sm:$0xff]
    %v35 = vld [vmem:[#allocation2 + $0x10] sm:$0xff]
    %v36 = vld [vmem:[#allocation2 + $0x18] sm:$0xff]
    %v37 = vld [vmem:[#allocation2 + $0x20] sm:$0xff]
    %v38 = vld [vmem:[#allocation2 + $0x28] sm:$0xff]
    %v39 = vld [vmem:[#allocation2 + $0x30] sm:$0xff]
    %v40 = vld [vmem:[#allocation2 + $0x38] sm:$0xff]
    %v41 = vld [vmem:[#allocation2 + $0x40] sm:$0xff]
    %v42 = vld [vmem:[#allocation2 + $0x48] sm:$0xff]
    %v43 = vld [vmem:[#allocation2 + $0x50] sm:$0xff]
    %v44 = vld [vmem:[#allocation2 + $0x58] sm:$0xff]
    %v45 = vld [vmem:[#allocation2 + $0x60] sm:$0xff]
    %v46 = vld [vmem:[#allocation2 + $0x68] sm:$0xff]
    %v47 = vld [vmem:[#allocation2 + $0x70] sm:$0xff]
    %v48 = vld [vmem:[#allocation2 + $0x78] sm:$0xff]
    %v49 = vld [vmem:[#allocation2 + $0x80] sm:$0xff]
    %v50 = vld [vmem:[#allocation2 + $0x88] sm:$0xff]
    %v51 = vld [vmem:[#allocation2 + $0x90] sm:$0xff]
    %v52 = vld [vmem:[#allocation2 + $0x98] sm:$0xff]
    %v53 = vld [vmem:[#allocation2 + $0xa0] sm:$0xff]
    %v54 = vld [vmem:[#allocation2 + $0xa8] sm:$0xff]
    %v55 = vld [vmem:[#allocation2 + $0xb0] sm:$0xff]
    %v56 = vld [vmem:[#allocation2 + $0xb8] sm:$0xff]
    %v57 = vld [vmem:[#allocation2 + $0xc0] sm:$0xff]
    %v58 = vld [vmem:[#allocation2 + $0xc8] sm:$0xff]
    %v59 = vld [vmem:[#allocation2 + $0xd0] sm:$0xff]
    %v60 = vld [vmem:[#allocation2 + $0xd8] sm:$0xff]
    %v61 = vld [vmem:[#allocation2 + $0xe0] sm:$0xff]
    %v62 = vld [vmem:[#allocation2 + $0xe8] sm:$0xff]
    %v63 = vld [vmem:[#allocation2 + $0xf0] sm:$0xff]
    %v64 = vld [vmem:[#allocation2 + $0xf8] sm:$0xff]
    %v65 = vld [vmem:[#allocation2 + $0x100] sm:$0xff]
    %v66 = vld [vmem:[#allocation2 + $0x108] sm:$0xff]
    %v67 = vld [vmem:[#allocation2 + $0x110] sm:$0xff]
    %v68 = vld [vmem:[#allocation2 + $0x118] sm:$0xff]
    %v69 = vld [vmem:[#allocation2 + $0x120] sm:$0xff]
    %v70 = vld [vmem:[#allocation2 + $0x128] sm:$0xff]
    %v71 = vld [vmem:[#allocation2 + $0x130] sm:$0xff]
    %v72 = vld [vmem:[#allocation2 + $0x138] sm:$0xff]
    %v73 = vld [vmem:[#allocation2 + $0x140] sm:$0xff]
    %v74 = vld [vmem:[#allocation2 + $0x148] sm:$0xff]
    %v75 = vld [vmem:[#allocation2 + $0x150] sm:$0xff]
    %v76 = vld [vmem:[#allocation2 + $0x158] sm:$0xff]
    %v77 = vld [vmem:[#allocation2 + $0x160] sm:$0xff]
    %v78 = vld [vmem:[#allocation2 + $0x168] sm:$0xff]
    %v79 = vld [vmem:[#allocation2 + $0x170] sm:$0xff]
    %v80 = vld [vmem:[#allocation2 + $0x178] sm:$0xff]
    %v81 = vld [vmem:[#allocation2 + $0x180] sm:$0xff]
    %v82 = vld [vmem:[#allocation2 + $0x188] sm:$0xff]
    %v83 = vld [vmem:[#allocation2 + $0x190] sm:$0xff]
    %v84 = vld [vmem:[#allocation2 + $0x198] sm:$0xff]
    %v85 = vld [vmem:[#allocation2 + $0x1a0] sm:$0xff]
    %v86 = vld [vmem:[#allocation2 + $0x1a8] sm:$0xff]
    %v87 = vld [vmem:[#allocation2 + $0x1b0] sm:$0xff]
    %v88 = vld [vmem:[#allocation2 + $0x1b8] sm:$0xff]
    %v89 = vld [vmem:[#allocation2 + $0x1c0] sm:$0xff]
    %v90 = vld [vmem:[#allocation2 + $0x1c8] sm:$0xff]
    %v91 = vld [vmem:[#allocation2 + $0x1d0] sm:$0xff]
    %v92 = vld [vmem:[#allocation2 + $0x1d8] sm:$0xff]
    %v93 = vld [vmem:[#allocation2 + $0x1e0] sm:$0xff]
    %v94 = vld [vmem:[#allocation2 + $0x1e8] sm:$0xff]
    %v95 = vld [vmem:[#allocation2 + $0x1f0] sm:$0xff]
    %v96 = vld [vmem:[#allocation2 + $0x1f8] sm:$0xff]
    %v97 = vld [vmem:[#allocation2 + $0x200] sm:$0xff]
    %v98 = vld [vmem:[#allocation2 + $0x208] sm:$0xff]
    %v99 = vld [vmem:[#allocation2 + $0x210] sm:$0xff]
    %v100 = vld [vmem:[#allocation2 + $0x218] sm:$0xff]
    %v101 = vld [vmem:[#allocation2 + $0x220] sm:$0xff]
    %v102 = vld [vmem:[#allocation2 + $0x228] sm:$0xff]
    %v103 = vld [vmem:[#allocation2 + $0x230] sm:$0xff]
    %v104 = vld [vmem:[#allocation2 + $0x238] sm:$0xff]
    %v105 = vld [vmem:[#allocation2 + $0x240] sm:$0xff]
    %v106 = vld [vmem:[#allocation2 + $0x248] sm:$0xff]
    %v107 = vld [vmem:[#allocation2 + $0x250] sm:$0xff]
    %v108 = vld [vmem:[#allocation2 + $0x258] sm:$0xff]
    %v109 = vld [vmem:[#allocation2 + $0x260] sm:$0xff]
    %v110 = vld [vmem:[#allocation2 + $0x268] sm:$0xff]
    %v111 = vld [vmem:[#allocation2 + $0x270] sm:$0xff]
    %v112 = vld [vmem:[#allocation2 + $0x278] sm:$0xff]
    %v113 = vld [vmem:[#allocation2 + $0x280] sm:$0xff]
    %v114 = vld [vmem:[#allocation2 + $0x288] sm:$0xff]
    %v115 = vld [vmem:[#allocation2 + $0x290] sm:$0xff]
    %v116 = vld [vmem:[#allocation2 + $0x298] sm:$0xff]
    %v117 = vld [vmem:[#allocation2 + $0x2a0] sm:$0xff]
    %v118 = vld [vmem:[#allocation2 + $0x2a8] sm:$0xff]
    %v119 = vld [vmem:[#allocation2 + $0x2b0] sm:$0xff]
    %v120 = vld [vmem:[#allocation2 + $0x2b8] sm:$0xff]
    %v121 = vld [vmem:[#allocation2 + $0x2c0] sm:$0xff]
    %v122 = vld [vmem:[#allocation2 + $0x2c8] sm:$0xff]
    %v123 = vld [vmem:[#allocation2 + $0x2d0] sm:$0xff]
    %v124 = vld [vmem:[#allocation2 + $0x2d8] sm:$0xff]
    %v125 = vld [vmem:[#allocation2 + $0x2e0] sm:$0xff]
    %v126 = vld [vmem:[#allocation2 + $0x2e8] sm:$0xff]
    %v127 = vld [vmem:[#allocation2 + $0x2f0] sm:$0xff]
    %v128 = vld [vmem:[#allocation2 + $0x2f8] sm:$0xff]
    %v129 = vld [vmem:[#allocation2 + $0x300] sm:$0xff]
    %v130 = vld [vmem:[#allocation2 + $0x308] sm:$0xff]
    %v131 = vld [vmem:[#allocation2 + $0x310] sm:$0xff]
    %v132 = vld [vmem:[#allocation2 + $0x318] sm:$0xff]
    %v133 = vld [vmem:[#allocation2 + $0x320] sm:$0xff]
    %v134 = vld [vmem:[#allocation2 + $0x328] sm:$0xff]
    %v135 = vld [vmem:[#allocation2 + $0x330] sm:$0xff]
    %v136 = vld [vmem:[#allocation2 + $0x338] sm:$0xff]
    %v137 = vld [vmem:[#allocation2 + $0x340] sm:$0xff]
    %v138 = vld [vmem:[#allocation2 + $0x348] sm:$0xff]
    %v139 = vld [vmem:[#allocation2 + $0x350] sm:$0xff]
    %v140 = vld [vmem:[#allocation2 + $0x358] sm:$0xff]
    %v141 = vld [vmem:[#allocation2 + $0x360] sm:$0xff]
    %v142 = vld [vmem:[#allocation2 + $0x368] sm:$0xff]
    %v143 = vld [vmem:[#allocation2 + $0x370] sm:$0xff]
    %v144 = vld [vmem:[#allocation2 + $0x378] sm:$0xff]
    %v145 = vld [vmem:[#allocation2 + $0x380] sm:$0xff]
    %v146 = vld [vmem:[#allocation2 + $0x388] sm:$0xff]
    %v147 = vld [vmem:[#allocation2 + $0x390] sm:$0xff]
    %v148 = vld [vmem:[#allocation2 + $0x398] sm:$0xff]
    %v149 = vld [vmem:[#allocation2 + $0x3a0] sm:$0xff]
    %v150 = vld [vmem:[#allocation2 + $0x3a8] sm:$0xff]
    %v151 = vld [vmem:[#allocation2 + $0x3b0] sm:$0xff]
    %v152 = vld [vmem:[#allocation2 + $0x3b8] sm:$0xff]
    %v153 = vld [vmem:[#allocation2 + $0x3c0] sm:$0xff]
    %v154 = vld [vmem:[#allocation2 + $0x3c8] sm:$0xff]
    %v155 = vld [vmem:[#allocation2 + $0x3d0] sm:$0xff]
    %v156 = vld [vmem:[#allocation2 + $0x3d8] sm:$0xff]
    %v157 = vld [vmem:[#allocation2 + $0x3e0] sm:$0xff]
    %v158 = vld [vmem:[#allocation2 + $0x3e8] sm:$0xff]
    %v159 = vld [vmem:[#allocation2 + $0x3f0] sm:$0xff]
    %v160 = vld [vmem:[#allocation2 + $0x3f8] sm:$0xff]
    %v161 = vld [vmem:[#allocation2 + $0x400] sm:$0xff]
    %v162 = vld [vmem:[#allocation2 + $0x408] sm:$0xff]
    %v163 = vld [vmem:[#allocation2 + $0x410] sm:$0xff]
    %v164 = vld [vmem:[#allocation2 + $0x418] sm:$0xff]
    %v165 = vld [vmem:[#allocation2 + $0x420] sm:$0xff]
    %v166 = vld [vmem:[#allocation2 + $0x428] sm:$0xff]
    %v167 = vld [vmem:[#allocation2 + $0x430] sm:$0xff]
    %v168 = vld [vmem:[#allocation2 + $0x438] sm:$0xff]
    %v169 = vld [vmem:[#allocation2 + $0x440] sm:$0xff]
    %v170 = vld [vmem:[#allocation2 + $0x448] sm:$0xff]
    %v171 = vld [vmem:[#allocation2 + $0x450] sm:$0xff]
    %v172 = vld [vmem:[#allocation2 + $0x458] sm:$0xff]
    %v173 = vld [vmem:[#allocation2 + $0x460] sm:$0xff]
    %v174 = vld [vmem:[#allocation2 + $0x468] sm:$0xff]
    %v175 = vld [vmem:[#allocation2 + $0x470] sm:$0xff]
    %v176 = vld [vmem:[#allocation2 + $0x478] sm:$0xff]
    %v177 = vld [vmem:[#allocation2 + $0x480] sm:$0xff]
    %v178 = vld [vmem:[#allocation2 + $0x488] sm:$0xff]
    %v179 = vld [vmem:[#allocation2 + $0x490] sm:$0xff]
    %v180 = vld [vmem:[#allocation2 + $0x498] sm:$0xff]
    %v181 = vld [vmem:[#allocation2 + $0x4a0] sm:$0xff]
    %v182 = vld [vmem:[#allocation2 + $0x4a8] sm:$0xff]
    %v183 = vld [vmem:[#allocation2 + $0x4b0] sm:$0xff]
    %v184 = vld [vmem:[#allocation2 + $0x4b8] sm:$0xff]
    %v185 = vld [vmem:[#allocation2 + $0x4c0] sm:$0xff]
    %v186 = vld [vmem:[#allocation2 + $0x4c8] sm:$0xff]
    %v187 = vld [vmem:[#allocation2 + $0x4d0] sm:$0xff]
    %v188 = vld [vmem:[#allocation2 + $0x4d8] sm:$0xff]
    %v189 = vld [vmem:[#allocation2 + $0x4e0] sm:$0xff]
    %v190 = vld [vmem:[#allocation2 + $0x4e8] sm:$0xff]
    %v191 = vld [vmem:[#allocation2 + $0x4f0] sm:$0xff]
    %v192 = vld [vmem:[#allocation2 + $0x4f8] sm:$0xff]
    %v193 = vld [vmem:[#allocation2 + $0x500] sm:$0xff]
    %v194 = vld [vmem:[#allocation2 + $0x508] sm:$0xff]
    %v195 = vld [vmem:[#allocation2 + $0x510] sm:$0xff]
    %v196 = vld [vmem:[#allocation2 + $0x518] sm:$0xff]
    %v197 = vld [vmem:[#allocation2 + $0x520] sm:$0xff]
    %v198 = vld [vmem:[#allocation2 + $0x528] sm:$0xff]
    %v199 = vld [vmem:[#allocation2 + $0x530] sm:$0xff]
    %v200 = vld [vmem:[#allocation2 + $0x538] sm:$0xff]
    %v201 = vld [vmem:[#allocation2 + $0x540] sm:$0xff]
    %v202 = vld [vmem:[#allocation2 + $0x548] sm:$0xff]
    %v203 = vld [vmem:[#allocation2 + $0x550] sm:$0xff]
    %v204 = vld [vmem:[#allocation2 + $0x558] sm:$0xff]
    %v205 = vld [vmem:[#allocation2 + $0x560] sm:$0xff]
    %v206 = vld [vmem:[#allocation2 + $0x568] sm:$0xff]
    %v207 = vld [vmem:[#allocation2 + $0x570] sm:$0xff]
    %v208 = vld [vmem:[#allocation2 + $0x578] sm:$0xff]
    %v209 = vld [vmem:[#allocation2 + $0x580] sm:$0xff]
    %v210 = vld [vmem:[#allocation2 + $0x588] sm:$0xff]
    %v211 = vld [vmem:[#allocation2 + $0x590] sm:$0xff]
    %v212 = vld [vmem:[#allocation2 + $0x598] sm:$0xff]
    %v213 = vld [vmem:[#allocation2 + $0x5a0] sm:$0xff]
    %v214 = vld [vmem:[#allocation2 + $0x5a8] sm:$0xff]
    %v215 = vld [vmem:[#allocation2 + $0x5b0] sm:$0xff]
    %v216 = vld [vmem:[#allocation2 + $0x5b8] sm:$0xff]
    %v217 = vld [vmem:[#allocation2 + $0x5c0] sm:$0xff]
    %v218 = vld [vmem:[#allocation2 + $0x5c8] sm:$0xff]
    %v219 = vld [vmem:[#allocation2 + $0x5d0] sm:$0xff]
    %v220 = vld [vmem:[#allocation2 + $0x5d8] sm:$0xff]
    %v221 = vld [vmem:[#allocation2 + $0x5e0] sm:$0xff]
    %v222 = vld [vmem:[#allocation2 + $0x5e8] sm:$0xff]
    %v223 = vld [vmem:[#allocation2 + $0x5f0] sm:$0xff]
    %v224 = vld [vmem:[#allocation2 + $0x5f8] sm:$0xff]
    %v225 = vld [vmem:[#allocation2 + $0x600] sm:$0xff]
    %v226 = vld [vmem:[#allocation2 + $0x608] sm:$0xff]
    %v227 = vld [vmem:[#allocation2 + $0x610] sm:$0xff]
    %v228 = vld [vmem:[#allocation2 + $0x618] sm:$0xff]
    %v229 = vld [vmem:[#allocation2 + $0x620] sm:$0xff]
    %v230 = vld [vmem:[#allocation2 + $0x628] sm:$0xff]
    %v231 = vld [vmem:[#allocation2 + $0x630] sm:$0xff]
    %v232 = vld [vmem:[#allocation2 + $0x638] sm:$0xff]
    %v233 = vld [vmem:[#allocation2 + $0x640] sm:$0xff]
    %v234 = vld [vmem:[#allocation2 + $0x648] sm:$0xff]
    %v235 = vld [vmem:[#allocation2 + $0x650] sm:$0xff]
    %v236 = vld [vmem:[#allocation2 + $0x658] sm:$0xff]
    %v237 = vld [vmem:[#allocation2 + $0x660] sm:$0xff]
    %v238 = vld [vmem:[#allocation2 + $0x668] sm:$0xff]
    %v239 = vld [vmem:[#allocation2 + $0x670] sm:$0xff]
    %v240 = vld [vmem:[#allocation2 + $0x678] sm:$0xff]
    %v241 = vld [vmem:[#allocation2 + $0x680] sm:$0xff]
    %v242 = vld [vmem:[#allocation2 + $0x688] sm:$0xff]
    %v243 = vld [vmem:[#allocation2 + $0x690] sm:$0xff]
    %v244 = vld [vmem:[#allocation2 + $0x698] sm:$0xff]
    %v245 = vld [vmem:[#allocation2 + $0x6a0] sm:$0xff]
    %v246 = vld [vmem:[#allocation2 + $0x6a8] sm:$0xff]
    %v247 = vld [vmem:[#allocation2 + $0x6b0] sm:$0xff]
    %v248 = vld [vmem:[#allocation2 + $0x6b8] sm:$0xff]
    %v249 = vld [vmem:[#allocation2 + $0x6c0] sm:$0xff]
    %v250 = vld [vmem:[#allocation2 + $0x6c8] sm:$0xff]
    %v251 = vld [vmem:[#allocation2 + $0x6d0] sm:$0xff]
    %v252 = vld [vmem:[#allocation2 + $0x6d8] sm:$0xff]
    %v253 = vld [vmem:[#allocation2 + $0x6e0] sm:$0xff]
    %v254 = vld [vmem:[#allocation2 + $0x6e8] sm:$0xff]
    %v255 = vld [vmem:[#allocation2 + $0x6f0] sm:$0xff]
    %v256 = vld [vmem:[#allocation2 + $0x6f8] sm:$0xff]
    %v257 = vld [vmem:[#allocation2 + $0x700] sm:$0xff]
    %v258 = vld [vmem:[#allocation2 + $0x708] sm:$0xff]
    %v259 = vld [vmem:[#allocation2 + $0x710] sm:$0xff]
    %v260 = vld [vmem:[#allocation2 + $0x718] sm:$0xff]
    %v261 = vld [vmem:[#allocation2 + $0x720] sm:$0xff]
    %v262 = vld [vmem:[#allocation2 + $0x728] sm:$0xff]
    %v263 = vld [vmem:[#allocation2 + $0x730] sm:$0xff]
    %v264 = vld [vmem:[#allocation2 + $0x738] sm:$0xff]
    %v265 = vld [vmem:[#allocation2 + $0x740] sm:$0xff]
    %v266 = vld [vmem:[#allocation2 + $0x748] sm:$0xff]
    %v267 = vld [vmem:[#allocation2 + $0x750] sm:$0xff]
    %v268 = vld [vmem:[#allocation2 + $0x758] sm:$0xff]
    %v269 = vld [vmem:[#allocation2 + $0x760] sm:$0xff]
    %v270 = vld [vmem:[#allocation2 + $0x768] sm:$0xff]
    %v271 = vld [vmem:[#allocation2 + $0x770] sm:$0xff]
    %v272 = vld [vmem:[#allocation2 + $0x778] sm:$0xff]
    %v273 = vld [vmem:[#allocation2 + $0x780] sm:$0xff]
    %v274 = vld [vmem:[#allocation2 + $0x788] sm:$0xff]
    %v275 = vld [vmem:[#allocation2 + $0x790] sm:$0xff]
    %v276 = vld [vmem:[#allocation2 + $0x798] sm:$0xff]
    %v277 = vld [vmem:[#allocation2 + $0x7a0] sm:$0xff]
    %v278 = vld [vmem:[#allocation2 + $0x7a8] sm:$0xff]
    %v279 = vld [vmem:[#allocation2 + $0x7b0] sm:$0xff]
    %v280 = vld [vmem:[#allocation2 + $0x7b8] sm:$0xff]
    %v281 = vld [vmem:[#allocation2 + $0x7c0] sm:$0xff]
    %v282 = vld [vmem:[#allocation2 + $0x7c8] sm:$0xff]
    %v283 = vld [vmem:[#allocation2 + $0x7d0] sm:$0xff]
    %v284 = vld [vmem:[#allocation2 + $0x7d8] sm:$0xff]
    %v285 = vld [vmem:[#allocation2 + $0x7e0] sm:$0xff]
    %v286 = vld [vmem:[#allocation2 + $0x7e8] sm:$0xff]
    %v287 = vld [vmem:[#allocation2 + $0x7f0] sm:$0xff]
    %v288 = vld [vmem:[#allocation2 + $0x7f8] sm:$0xff]
    %v289 = vld [vmem:[#allocation2 + $0x800] sm:$0xff]
    %v290 = vld [vmem:[#allocation2 + $0x808] sm:$0xff]
    %v291 = vld [vmem:[#allocation2 + $0x810] sm:$0xff]
    %v292 = vld [vmem:[#allocation2 + $0x818] sm:$0xff]
    %v293 = vld [vmem:[#allocation2 + $0x820] sm:$0xff]
    %v294 = vld [vmem:[#allocation2 + $0x828] sm:$0xff]
    %v295 = vld [vmem:[#allocation2 + $0x830] sm:$0xff]
    %v296 = vld [vmem:[#allocation2 + $0x838] sm:$0xff]
    %v297 = vld [vmem:[#allocation2 + $0x840] sm:$0xff]
    %v298 = vld [vmem:[#allocation2 + $0x848] sm:$0xff]
    %v299 = vld [vmem:[#allocation2 + $0x850] sm:$0xff]
    %v300 = vld [vmem:[#allocation2 + $0x858] sm:$0xff]
    %v301 = vld [vmem:[#allocation2 + $0x860] sm:$0xff]
    %v302 = vld [vmem:[#allocation2 + $0x868] sm:$0xff]
    %v303 = vld [vmem:[#allocation2 + $0x870] sm:$0xff]
    %v304 = vld [vmem:[#allocation2 + $0x878] sm:$0xff]
    %v305 = vld [vmem:[#allocation2 + $0x880] sm:$0xff]
    %v306 = vld [vmem:[#allocation2 + $0x888] sm:$0xff]
    %v307 = vld [vmem:[#allocation2 + $0x890] sm:$0xff]
    %v308 = vld [vmem:[#allocation2 + $0x898] sm:$0xff]
    %v309 = vld [vmem:[#allocation2 + $0x8a0] sm:$0xff]
    %v310 = vld [vmem:[#allocation2 + $0x8a8] sm:$0xff]
    %v311 = vld [vmem:[#allocation2 + $0x8b0] sm:$0xff]
    %v312 = vld [vmem:[#allocation2 + $0x8b8] sm:$0xff]
    %v313 = vld [vmem:[#allocation2 + $0x8c0] sm:$0xff]
    %v314 = vld [vmem:[#allocation2 + $0x8c8] sm:$0xff]
    %v315 = vld [vmem:[#allocation2 + $0x8d0] sm:$0xff]
    %v316 = vld [vmem:[#allocation2 + $0x8d8] sm:$0xff]
    %v317 = vld [vmem:[#allocation2 + $0x8e0] sm:$0xff]
    %v318 = vld [vmem:[#allocation2 + $0x8e8] sm:$0xff]
    %v319 = vld [vmem:[#allocation2 + $0x8f0] sm:$0xff]
    %v320 = vld [vmem:[#allocation2 + $0x8f8] sm:$0xff]
    %v321 = vld [vmem:[#allocation2 + $0x900] sm:$0xff]
    %v322 = vld [vmem:[#allocation2 + $0x908] sm:$0xff]
    %v323 = vld [vmem:[#allocation2 + $0x910] sm:$0xff]
    %v324 = vld [vmem:[#allocation2 + $0x918] sm:$0xff]
    %v325 = vld [vmem:[#allocation2 + $0x920] sm:$0xff]
    %v326 = vld [vmem:[#allocation2 + $0x928] sm:$0xff]
    %v327 = vld [vmem:[#allocation2 + $0x930] sm:$0xff]
    %v328 = vld [vmem:[#allocation2 + $0x938] sm:$0xff]
    %v329 = vld [vmem:[#allocation2 + $0x940] sm:$0xff]
    %v330 = vld [vmem:[#allocation2 + $0x948] sm:$0xff]
    %v331 = vld [vmem:[#allocation2 + $0x950] sm:$0xff]
    %v332 = vld [vmem:[#allocation2 + $0x958] sm:$0xff]
    %v333 = vld [vmem:[#allocation2 + $0x960] sm:$0xff]
    %v334 = vld [vmem:[#allocation2 + $0x968] sm:$0xff]
    %v335 = vld [vmem:[#allocation2 + $0x970] sm:$0xff]
    %v336 = vld [vmem:[#allocation2 + $0x978] sm:$0xff]
    %v337 = vld [vmem:[#allocation2 + $0x980] sm:$0xff]
    %v338 = vld [vmem:[#allocation2 + $0x988] sm:$0xff]
    %v339 = vld [vmem:[#allocation2 + $0x990] sm:$0xff]
    %v340 = vld [vmem:[#allocation2 + $0x998] sm:$0xff]
    %v341 = vld [vmem:[#allocation2 + $0x9a0] sm:$0xff]
    %v342 = vld [vmem:[#allocation2 + $0x9a8] sm:$0xff]
    %v343 = vld [vmem:[#allocation2 + $0x9b0] sm:$0xff]
    %v344 = vld [vmem:[#allocation2 + $0x9b8] sm:$0xff]
    %v345 = vld [vmem:[#allocation2 + $0x9c0] sm:$0xff]
    %v346 = vld [vmem:[#allocation2 + $0x9c8] sm:$0xff]
    %v347 = vld [vmem:[#allocation2 + $0x9d0] sm:$0xff]
    %v348 = vld [vmem:[#allocation2 + $0x9d8] sm:$0xff]
    %v349 = vld [vmem:[#allocation2 + $0x9e0] sm:$0xff]
    %v350 = vld [vmem:[#allocation2 + $0x9e8] sm:$0xff]
    %v351 = vld [vmem:[#allocation2 + $0x9f0] sm:$0xff]
    %v352 = vld [vmem:[#allocation2 + $0x9f8] sm:$0xff]
    %v353 = vld [vmem:[#allocation2 + $0xa00] sm:$0xff]
    %v354 = vld [vmem:[#allocation2 + $0xa08] sm:$0xff]
    %v355 = vld [vmem:[#allocation2 + $0xa10] sm:$0xff]
    %v356 = vld [vmem:[#allocation2 + $0xa18] sm:$0xff]
    %v357 = vld [vmem:[#allocation2 + $0xa20] sm:$0xff]
    %v358 = vld [vmem:[#allocation2 + $0xa28] sm:$0xff]
    %v359 = vld [vmem:[#allocation2 + $0xa30] sm:$0xff]
    %v360 = vld [vmem:[#allocation2 + $0xa38] sm:$0xff]
    %v361 = vld [vmem:[#allocation2 + $0xa40] sm:$0xff]
    %v362 = vld [vmem:[#allocation2 + $0xa48] sm:$0xff]
    %v363 = vld [vmem:[#allocation2 + $0xa50] sm:$0xff]
    %v364 = vld [vmem:[#allocation2 + $0xa58] sm:$0xff]
    %v365 = vld [vmem:[#allocation2 + $0xa60] sm:$0xff]
    %v366 = vld [vmem:[#allocation2 + $0xa68] sm:$0xff]
    %v367 = vld [vmem:[#allocation2 + $0xa70] sm:$0xff]
    %v368 = vld [vmem:[#allocation2 + $0xa78] sm:$0xff]
    %v369 = vld [vmem:[#allocation2 + $0xa80] sm:$0xff]
    %v370 = vld [vmem:[#allocation2 + $0xa88] sm:$0xff]
    %v371 = vld [vmem:[#allocation2 + $0xa90] sm:$0xff]
    %v372 = vld [vmem:[#allocation2 + $0xa98] sm:$0xff]
    %v373 = vld [vmem:[#allocation2 + $0xaa0] sm:$0xff]
    %v374 = vld [vmem:[#allocation2 + $0xaa8] sm:$0xff]
    %v375 = vld [vmem:[#allocation2 + $0xab0] sm:$0xff]
    %v376 = vld [vmem:[#allocation2 + $0xab8] sm:$0xff]
    %v377 = vld [vmem:[#allocation2 + $0xac0] sm:$0xff]
    %v378 = vld [vmem:[#allocation2 + $0xac8] sm:$0xff]
    %v379 = vld [vmem:[#allocation2 + $0xad0] sm:$0xff]
    %v380 = vld [vmem:[#allocation2 + $0xad8] sm:$0xff]
    %v381 = vld [vmem:[#allocation2 + $0xae0] sm:$0xff]
    %v382 = vld [vmem:[#allocation2 + $0xae8] sm:$0xff]
    %v383 = vld [vmem:[#allocation2 + $0xaf0] sm:$0xff]
    %v384 = vld [vmem:[#allocation2 + $0xaf8] sm:$0xff]
    %v385 = vld [vmem:[#allocation2 + $0xb00] sm:$0xff]
    %v386 = vld [vmem:[#allocation2 + $0xb08] sm:$0xff]
    %v387 = vld [vmem:[#allocation2 + $0xb10] sm:$0xff]
    %v388 = vld [vmem:[#allocation2 + $0xb18] sm:$0xff]
    %v389 = vld [vmem:[#allocation2 + $0xb20] sm:$0xff]
    %v390 = vld [vmem:[#allocation2 + $0xb28] sm:$0xff]
    %v391 = vld [vmem:[#allocation2 + $0xb30] sm:$0xff]
    %v392 = vld [vmem:[#allocation2 + $0xb38] sm:$0xff]
    %v393 = vld [vmem:[#allocation2 + $0xb40] sm:$0xff]
    %v394 = vld [vmem:[#allocation2 + $0xb48] sm:$0xff]
    %v395 = vld [vmem:[#allocation2 + $0xb50] sm:$0xff]
    %v396 = vld [vmem:[#allocation2 + $0xb58] sm:$0xff]
    %v397 = vld [vmem:[#allocation2 + $0xb60] sm:$0xff]
    %v398 = vld [vmem:[#allocation2 + $0xb68] sm:$0xff]
    %v399 = vld [vmem:[#allocation2 + $0xb70] sm:$0xff]
    %v400 = vld [vmem:[#allocation2 + $0xb78] sm:$0xff]
    %v401 = vld [vmem:[#allocation2 + $0xb80] sm:$0xff]
    %v402 = vld [vmem:[#allocation2 + $0xb88] sm:$0xff]
    %v403 = vld [vmem:[#allocation2 + $0xb90] sm:$0xff]
    %v404 = vld [vmem:[#allocation2 + $0xb98] sm:$0xff]
    %v405 = vld [vmem:[#allocation2 + $0xba0] sm:$0xff]
    %v406 = vld [vmem:[#allocation2 + $0xba8] sm:$0xff]
    %v407 = vld [vmem:[#allocation2 + $0xbb0] sm:$0xff]
    %v408 = vld [vmem:[#allocation2 + $0xbb8] sm:$0xff]
    %v409 = vld [vmem:[#allocation2 + $0xbc0] sm:$0xff]
    %v410 = vld [vmem:[#allocation2 + $0xbc8] sm:$0xff]
    %v411 = vld [vmem:[#allocation2 + $0xbd0] sm:$0xff]
    %v412 = vld [vmem:[#allocation2 + $0xbd8] sm:$0xff]
    %v413 = vld [vmem:[#allocation2 + $0xbe0] sm:$0xff]
    %v414 = vld [vmem:[#allocation2 + $0xbe8] sm:$0xff]
    %v415 = vld [vmem:[#allocation2 + $0xbf0] sm:$0xff]
    %v416 = vld [vmem:[#allocation2 + $0xbf8] sm:$0xff]
    %v417 = vld [vmem:[#allocation2 + $0xc00] sm:$0xff]
    %v418 = vld [vmem:[#allocation2 + $0xc08] sm:$0xff]
    %v419 = vld [vmem:[#allocation2 + $0xc10] sm:$0xff]
    %v420 = vld [vmem:[#allocation2 + $0xc18] sm:$0xff]
    %v421 = vld [vmem:[#allocation2 + $0xc20] sm:$0xff]
    %v422 = vld [vmem:[#allocation2 + $0xc28] sm:$0xff]
    %v423 = vld [vmem:[#allocation2 + $0xc30] sm:$0xff]
    %v424 = vld [vmem:[#allocation2 + $0xc38] sm:$0xff]
    %v425 = vld [vmem:[#allocation2 + $0xc40] sm:$0xff]
    %v426 = vld [vmem:[#allocation2 + $0xc48] sm:$0xff]
    %v427 = vld [vmem:[#allocation2 + $0xc50] sm:$0xff]
    %v428 = vld [vmem:[#allocation2 + $0xc58] sm:$0xff]
    %v429 = vld [vmem:[#allocation2 + $0xc60] sm:$0xff]
    %v430 = vld [vmem:[#allocation2 + $0xc68] sm:$0xff]
    %v431 = vld [vmem:[#allocation2 + $0xc70] sm:$0xff]
    %v432 = vld [vmem:[#allocation2 + $0xc78] sm:$0xff]
    %v433 = vld [vmem:[#allocation2 + $0xc80] sm:$0xff]
    %v434 = vld [vmem:[#allocation2 + $0xc88] sm:$0xff]
    %v435 = vld [vmem:[#allocation2 + $0xc90] sm:$0xff]
    %v436 = vld [vmem:[#allocation2 + $0xc98] sm:$0xff]
    %v437 = vld [vmem:[#allocation2 + $0xca0] sm:$0xff]
    %v438 = vld [vmem:[#allocation2 + $0xca8] sm:$0xff]
    %v439 = vld [vmem:[#allocation2 + $0xcb0] sm:$0xff]
    %v440 = vld [vmem:[#allocation2 + $0xcb8] sm:$0xff]
    %v441 = vld [vmem:[#allocation2 + $0xcc0] sm:$0xff]
    %v442 = vld [vmem:[#allocation2 + $0xcc8] sm:$0xff]
    %v443 = vld [vmem:[#allocation2 + $0xcd0] sm:$0xff]
    %v444 = vld [vmem:[#allocation2 + $0xcd8] sm:$0xff]
    %v445 = vld [vmem:[#allocation2 + $0xce0] sm:$0xff]
    %v446 = vld [vmem:[#allocation2 + $0xce8] sm:$0xff]
    %v447 = vld [vmem:[#allocation2 + $0xcf0] sm:$0xff]
    %v448 = vld [vmem:[#allocation2 + $0xcf8] sm:$0xff]
    %v449 = vld [vmem:[#allocation2 + $0xd00] sm:$0xff]
    %v450 = vld [vmem:[#allocation2 + $0xd08] sm:$0xff]
    %v451 = vld [vmem:[#allocation2 + $0xd10] sm:$0xff]
    %v452 = vld [vmem:[#allocation2 + $0xd18] sm:$0xff]
    %v453 = vld [vmem:[#allocation2 + $0xd20] sm:$0xff]
    %v454 = vld [vmem:[#allocation2 + $0xd28] sm:$0xff]
    %v455 = vld [vmem:[#allocation2 + $0xd30] sm:$0xff]
    %v456 = vld [vmem:[#allocation2 + $0xd38] sm:$0xff]
    %v457 = vld [vmem:[#allocation2 + $0xd40] sm:$0xff]
    %v458 = vld [vmem:[#allocation2 + $0xd48] sm:$0xff]
    %v459 = vld [vmem:[#allocation2 + $0xd50] sm:$0xff]
    %v460 = vld [vmem:[#allocation2 + $0xd58] sm:$0xff]
    %v461 = vld [vmem:[#allocation2 + $0xd60] sm:$0xff]
    %v462 = vld [vmem:[#allocation2 + $0xd68] sm:$0xff]
    %v463 = vld [vmem:[#allocation2 + $0xd70] sm:$0xff]
    %v464 = vld [vmem:[#allocation2 + $0xd78] sm:$0xff]
    %v465 = vld [vmem:[#allocation2 + $0xd80] sm:$0xff]
    %v466 = vld [vmem:[#allocation2 + $0xd88] sm:$0xff]
    %v467 = vld [vmem:[#allocation2 + $0xd90] sm:$0xff]
    %v468 = vld [vmem:[#allocation2 + $0xd98] sm:$0xff]
    %v469 = vld [vmem:[#allocation2 + $0xda0] sm:$0xff]
    %v470 = vld [vmem:[#allocation2 + $0xda8] sm:$0xff]
    %v471 = vld [vmem:[#allocation2 + $0xdb0] sm:$0xff]
    %v472 = vld [vmem:[#allocation2 + $0xdb8] sm:$0xff]
    %v473 = vld [vmem:[#allocation2 + $0xdc0] sm:$0xff]
    %v474 = vld [vmem:[#allocation2 + $0xdc8] sm:$0xff]
    %v475 = vld [vmem:[#allocation2 + $0xdd0] sm:$0xff]
    %v476 = vld [vmem:[#allocation2 + $0xdd8] sm:$0xff]
    %v477 = vld [vmem:[#allocation2 + $0xde0] sm:$0xff]
    %v478 = vld [vmem:[#allocation2 + $0xde8] sm:$0xff]
    %v479 = vld [vmem:[#allocation2 + $0xdf0] sm:$0xff]
    %v480 = vld [vmem:[#allocation2 + $0xdf8] sm:$0xff]
    %v481 = vld [vmem:[#allocation2 + $0xe00] sm:$0xff]
    %v482 = vld [vmem:[#allocation2 + $0xe08] sm:$0xff]
    %v483 = vld [vmem:[#allocation2 + $0xe10] sm:$0xff]
    %v484 = vld [vmem:[#allocation2 + $0xe18] sm:$0xff]
    %v485 = vld [vmem:[#allocation2 + $0xe20] sm:$0xff]
    %v486 = vld [vmem:[#allocation2 + $0xe28] sm:$0xff]
    %v487 = vld [vmem:[#allocation2 + $0xe30] sm:$0xff]
    %v488 = vld [vmem:[#allocation2 + $0xe38] sm:$0xff]
    %v489 = vld [vmem:[#allocation2 + $0xe40] sm:$0xff]
    %v490 = vld [vmem:[#allocation2 + $0xe48] sm:$0xff]
    %v491 = vld [vmem:[#allocation2 + $0xe50] sm:$0xff]
    %v492 = vld [vmem:[#allocation2 + $0xe58] sm:$0xff]
    %v493 = vld [vmem:[#allocation2 + $0xe60] sm:$0xff]
    %v494 = vld [vmem:[#allocation2 + $0xe68] sm:$0xff]
    %v495 = vld [vmem:[#allocation2 + $0xe70] sm:$0xff]
    %v496 = vld [vmem:[#allocation2 + $0xe78] sm:$0xff]
    %v497 = vld [vmem:[#allocation2 + $0xe80] sm:$0xff]
    %v498 = vld [vmem:[#allocation2 + $0xe88] sm:$0xff]
    %v499 = vld [vmem:[#allocation2 + $0xe90] sm:$0xff]
    %v500 = vld [vmem:[#allocation2 + $0xe98] sm:$0xff]
    %v501 = vld [vmem:[#allocation2 + $0xea0] sm:$0xff]
    %v502 = vld [vmem:[#allocation2 + $0xea8] sm:$0xff]
    %v503 = vld [vmem:[#allocation2 + $0xeb0] sm:$0xff]
    %v504 = vld [vmem:[#allocation2 + $0xeb8] sm:$0xff]
    %v505 = vld [vmem:[#allocation2 + $0xec0] sm:$0xff]
    %v506 = vld [vmem:[#allocation2 + $0xec8] sm:$0xff]
    %v507 = vld [vmem:[#allocation2 + $0xed0] sm:$0xff]
    %v508 = vld [vmem:[#allocation2 + $0xed8] sm:$0xff]
    %v509 = vld [vmem:[#allocation2 + $0xee0] sm:$0xff]
    %v510 = vld [vmem:[#allocation2 + $0xee8] sm:$0xff]
    %v511 = vld [vmem:[#allocation2 + $0xef0] sm:$0xff]
    %v512 = vld [vmem:[#allocation2 + $0xef8] sm:$0xff]
    %v513 = vld [vmem:[#allocation2 + $0xf00] sm:$0xff]
    %v514 = vld [vmem:[#allocation2 + $0xf08] sm:$0xff]
    %v515 = vld [vmem:[#allocation2 + $0xf10] sm:$0xff]
    %v516 = vld [vmem:[#allocation2 + $0xf18] sm:$0xff]
    %v517 = vld [vmem:[#allocation2 + $0xf20] sm:$0xff]
    %v518 = vld [vmem:[#allocation2 + $0xf28] sm:$0xff]
    %v519 = vld [vmem:[#allocation2 + $0xf30] sm:$0xff]
    %v520 = vld [vmem:[#allocation2 + $0xf38] sm:$0xff]
    %v521 = vld [vmem:[#allocation2 + $0xf40] sm:$0xff]
    %v522 = vld [vmem:[#allocation2 + $0xf48] sm:$0xff]
    %v523 = vld [vmem:[#allocation2 + $0xf50] sm:$0xff]
    %v524 = vld [vmem:[#allocation2 + $0xf58] sm:$0xff]
    %v525 = vld [vmem:[#allocation2 + $0xf60] sm:$0xff]
    %v526 = vld [vmem:[#allocation2 + $0xf68] sm:$0xff]
    %v527 = vld [vmem:[#allocation2 + $0xf70] sm:$0xff]
    %v528 = vld [vmem:[#allocation2 + $0xf78] sm:$0xff]
    %v529 = vld [vmem:[#allocation2 + $0xf80] sm:$0xff]
    %v530 = vld [vmem:[#allocation2 + $0xf88] sm:$0xff]
    %v531 = vld [vmem:[#allocation2 + $0xf90] sm:$0xff]
    %v532 = vld [vmem:[#allocation2 + $0xf98] sm:$0xff]
    %v533 = vld [vmem:[#allocation2 + $0xfa0] sm:$0xff]
    %v534 = vld [vmem:[#allocation2 + $0xfa8] sm:$0xff]
    %v535 = vld [vmem:[#allocation2 + $0xfb0] sm:$0xff]
    %v536 = vld [vmem:[#allocation2 + $0xfb8] sm:$0xff]
    %v537 = vld [vmem:[#allocation2 + $0xfc0] sm:$0xff]
    %v538 = vld [vmem:[#allocation2 + $0xfc8] sm:$0xff]
    %v539 = vld [vmem:[#allocation2 + $0xfd0] sm:$0xff]
    %v540 = vld [vmem:[#allocation2 + $0xfd8] sm:$0xff]
    %v541 = vld [vmem:[#allocation2 + $0xfe0] sm:$0xff]
    %v542 = vld [vmem:[#allocation2 + $0xfe8] sm:$0xff]
    %v543 = vld [vmem:[#allocation2 + $0xff0] sm:$0xff]
    %v544 = vld [vmem:[#allocation2 + $0xff8] sm:$0xff]
    %v545 = vld [vmem:[#allocation2 + $0x1000] sm:$0xff]
    %v546 = vld [vmem:[#allocation2 + $0x1008] sm:$0xff]
    %v547 = vld [vmem:[#allocation2 + $0x1010] sm:$0xff]
    %v548 = vld [vmem:[#allocation2 + $0x1018] sm:$0xff]
    %v549 = vld [vmem:[#allocation2 + $0x1020] sm:$0xff]
    %v550 = vld [vmem:[#allocation2 + $0x1028] sm:$0xff]
    %v551 = vld [vmem:[#allocation2 + $0x1030] sm:$0xff]
    %v552 = vld [vmem:[#allocation2 + $0x1038] sm:$0xff]
    %v553 = vld [vmem:[#allocation2 + $0x1040] sm:$0xff]
    %v554 = vld [vmem:[#allocation2 + $0x1048] sm:$0xff]
    %v555 = vld [vmem:[#allocation2 + $0x1050] sm:$0xff]
    %v556 = vld [vmem:[#allocation2 + $0x1058] sm:$0xff]
    %v557 = vld [vmem:[#allocation2 + $0x1060] sm:$0xff]
    %v558 = vld [vmem:[#allocation2 + $0x1068] sm:$0xff]
    %v559 = vld [vmem:[#allocation2 + $0x1070] sm:$0xff]
    %v560 = vld [vmem:[#allocation2 + $0x1078] sm:$0xff]
    %v561 = vld [vmem:[#allocation2 + $0x1080] sm:$0xff]
    %v562 = vld [vmem:[#allocation2 + $0x1088] sm:$0xff]
    %v563 = vld [vmem:[#allocation2 + $0x1090] sm:$0xff]
    %v564 = vld [vmem:[#allocation2 + $0x1098] sm:$0xff]
    %v565 = vld [vmem:[#allocation2 + $0x10a0] sm:$0xff]
    %v566 = vld [vmem:[#allocation2 + $0x10a8] sm:$0xff]
    %v567 = vld [vmem:[#allocation2 + $0x10b0] sm:$0xff]
    %v568 = vld [vmem:[#allocation2 + $0x10b8] sm:$0xff]
    %v569 = vld [vmem:[#allocation2 + $0x10c0] sm:$0xff]
    %v570 = vld [vmem:[#allocation2 + $0x10c8] sm:$0xff]
    %v571 = vld [vmem:[#allocation2 + $0x10d0] sm:$0xff]
    %v572 = vld [vmem:[#allocation2 + $0x10d8] sm:$0xff]
    %v573 = vld [vmem:[#allocation2 + $0x10e0] sm:$0xff]
    %v574 = vld [vmem:[#allocation2 + $0x10e8] sm:$0xff]
    %v575 = vld [vmem:[#allocation2 + $0x10f0] sm:$0xff]
    %v576 = vld [vmem:[#allocation2 + $0x10f8] sm:$0xff]
    %v577 = vld [vmem:[#allocation2 + $0x1100] sm:$0xff]
    %v578 = vld [vmem:[#allocation2 + $0x1108] sm:$0xff]
    %v579 = vld [vmem:[#allocation2 + $0x1110] sm:$0xff]
    %v580 = vld [vmem:[#allocation2 + $0x1118] sm:$0xff]
    %v581 = vld [vmem:[#allocation2 + $0x1120] sm:$0xff]
    %v582 = vld [vmem:[#allocation2 + $0x1128] sm:$0xff]
    %v583 = vld [vmem:[#allocation2 + $0x1130] sm:$0xff]
    %v584 = vld [vmem:[#allocation2 + $0x1138] sm:$0xff]
    %v585 = vld [vmem:[#allocation2 + $0x1140] sm:$0xff]
    %v586 = vld [vmem:[#allocation2 + $0x1148] sm:$0xff]
    %v587 = vld [vmem:[#allocation2 + $0x1150] sm:$0xff]
    %v588 = vld [vmem:[#allocation2 + $0x1158] sm:$0xff]
    %v589 = vld [vmem:[#allocation2 + $0x1160] sm:$0xff]
    %v590 = vld [vmem:[#allocation2 + $0x1168] sm:$0xff]
    %v591 = vld [vmem:[#allocation2 + $0x1170] sm:$0xff]
    %v592 = vld [vmem:[#allocation2 + $0x1178] sm:$0xff]
    %v593 = vld [vmem:[#allocation2 + $0x1180] sm:$0xff]
    %v594 = vld [vmem:[#allocation2 + $0x1188] sm:$0xff]
    %v595 = vld [vmem:[#allocation2 + $0x1190] sm:$0xff]
    %v596 = vld [vmem:[#allocation2 + $0x1198] sm:$0xff]
    %v597 = vld [vmem:[#allocation2 + $0x11a0] sm:$0xff]
    %v598 = vld [vmem:[#allocation2 + $0x11a8] sm:$0xff]
    %v599 = vld [vmem:[#allocation2 + $0x11b0] sm:$0xff]
    %v600 = vld [vmem:[#allocation2 + $0x11b8] sm:$0xff]
    %v601 = vld [vmem:[#allocation2 + $0x11c0] sm:$0xff]
    %v602 = vld [vmem:[#allocation2 + $0x11c8] sm:$0xff]
    %v603 = vld [vmem:[#allocation2 + $0x11d0] sm:$0xff]
    %v604 = vld [vmem:[#allocation2 + $0x11d8] sm:$0xff]
    %v605 = vld [vmem:[#allocation2 + $0x11e0] sm:$0xff]
    %v606 = vld [vmem:[#allocation2 + $0x11e8] sm:$0xff]
    %v607 = vld [vmem:[#allocation2 + $0x11f0] sm:$0xff]
    %v608 = vld [vmem:[#allocation2 + $0x11f8] sm:$0xff]
    %v609 = vld [vmem:[#allocation2 + $0x1200] sm:$0xff]
    %v610 = vld [vmem:[#allocation2 + $0x1208] sm:$0xff]
    %v611 = vld [vmem:[#allocation2 + $0x1210] sm:$0xff]
    %v612 = vld [vmem:[#allocation2 + $0x1218] sm:$0xff]
    %v613 = vld [vmem:[#allocation2 + $0x1220] sm:$0xff]
    %v614 = vld [vmem:[#allocation2 + $0x1228] sm:$0xff]
    %v615 = vld [vmem:[#allocation2 + $0x1230] sm:$0xff]
    %v616 = vld [vmem:[#allocation2 + $0x1238] sm:$0xff]
    %v617 = vld [vmem:[#allocation2 + $0x1240] sm:$0xff]
    %v618 = vld [vmem:[#allocation2 + $0x1248] sm:$0xff]
    %v619 = vld [vmem:[#allocation2 + $0x1250] sm:$0xff]
    %v620 = vld [vmem:[#allocation2 + $0x1258] sm:$0xff]
    %v621 = vld [vmem:[#allocation2 + $0x1260] sm:$0xff]
    %v622 = vld [vmem:[#allocation2 + $0x1268] sm:$0xff]
    %v623 = vld [vmem:[#allocation2 + $0x1270] sm:$0xff]
    %v624 = vld [vmem:[#allocation2 + $0x1278] sm:$0xff]
    %v625 = vld [vmem:[#allocation2 + $0x1280] sm:$0xff]
    %v626 = vld [vmem:[#allocation2 + $0x1288] sm:$0xff]
    %v627 = vld [vmem:[#allocation2 + $0x1290] sm:$0xff]
    %v628 = vld [vmem:[#allocation2 + $0x1298] sm:$0xff]
    %v629 = vld [vmem:[#allocation2 + $0x12a0] sm:$0xff]
    %v630 = vld [vmem:[#allocation2 + $0x12a8] sm:$0xff]
    %v631 = vld [vmem:[#allocation2 + $0x12b0] sm:$0xff]
    %v632 = vld [vmem:[#allocation2 + $0x12b8] sm:$0xff]
    %v633 = vld [vmem:[#allocation2 + $0x12c0] sm:$0xff]
    %v634 = vld [vmem:[#allocation2 + $0x12c8] sm:$0xff]
    %v635 = vld [vmem:[#allocation2 + $0x12d0] sm:$0xff]
    %v636 = vld [vmem:[#allocation2 + $0x12d8] sm:$0xff]
    %v637 = vld [vmem:[#allocation2 + $0x12e0] sm:$0xff]
    %v638 = vld [vmem:[#allocation2 + $0x12e8] sm:$0xff]
    %v639 = vld [vmem:[#allocation2 + $0x12f0] sm:$0xff]
    %v640 = vld [vmem:[#allocation2 + $0x12f8] sm:$0xff]
    %v641 = vld [vmem:[#allocation2 + $0x1300] sm:$0xff]
    %v642 = vld [vmem:[#allocation2 + $0x1308] sm:$0xff]
    %v643 = vld [vmem:[#allocation2 + $0x1310] sm:$0xff]
    %v644 = vld [vmem:[#allocation2 + $0x1318] sm:$0xff]
    %v645 = vld [vmem:[#allocation2 + $0x1320] sm:$0xff]
    %v646 = vld [vmem:[#allocation2 + $0x1328] sm:$0xff]
    %v647 = vld [vmem:[#allocation2 + $0x1330] sm:$0xff]
    %v648 = vld [vmem:[#allocation2 + $0x1338] sm:$0xff]
    %v649 = vld [vmem:[#allocation2 + $0x1340] sm:$0xff]
    %v650 = vld [vmem:[#allocation2 + $0x1348] sm:$0xff]
    %v651 = vld [vmem:[#allocation2 + $0x1350] sm:$0xff]
    %v652 = vld [vmem:[#allocation2 + $0x1358] sm:$0xff]
    %v653 = vld [vmem:[#allocation2 + $0x1360] sm:$0xff]
    %v654 = vld [vmem:[#allocation2 + $0x1368] sm:$0xff]
    %v655 = vld [vmem:[#allocation2 + $0x1370] sm:$0xff]
    %v656 = vld [vmem:[#allocation2 + $0x1378] sm:$0xff]
    %v657 = vld [vmem:[#allocation2 + $0x1380] sm:$0xff]
    %v658 = vld [vmem:[#allocation2 + $0x1388] sm:$0xff]
    %v659 = vld [vmem:[#allocation2 + $0x1390] sm:$0xff]
    %v660 = vld [vmem:[#allocation2 + $0x1398] sm:$0xff]
    %v661 = vld [vmem:[#allocation2 + $0x13a0] sm:$0xff]
    %v662 = vld [vmem:[#allocation2 + $0x13a8] sm:$0xff]
    %v663 = vld [vmem:[#allocation2 + $0x13b0] sm:$0xff]
    %v664 = vld [vmem:[#allocation2 + $0x13b8] sm:$0xff]
    %v665 = vld [vmem:[#allocation2 + $0x13c0] sm:$0xff]
    %v666 = vld [vmem:[#allocation2 + $0x13c8] sm:$0xff]
    %v667 = vld [vmem:[#allocation2 + $0x13d0] sm:$0xff]
    %v668 = vld [vmem:[#allocation2 + $0x13d8] sm:$0xff]
    %v669 = vld [vmem:[#allocation2 + $0x13e0] sm:$0xff]
    %v670 = vld [vmem:[#allocation2 + $0x13e8] sm:$0xff]
    %v671 = vld [vmem:[#allocation2 + $0x13f0] sm:$0xff]
    %v672 = vld [vmem:[#allocation2 + $0x13f8] sm:$0xff]
    %v673 = vld [vmem:[#allocation2 + $0x1400] sm:$0xff]
    %v674 = vld [vmem:[#allocation2 + $0x1408] sm:$0xff]
    %v675 = vld [vmem:[#allocation2 + $0x1410] sm:$0xff]
    %v676 = vld [vmem:[#allocation2 + $0x1418] sm:$0xff]
    %v677 = vld [vmem:[#allocation2 + $0x1420] sm:$0xff]
    %v678 = vld [vmem:[#allocation2 + $0x1428] sm:$0xff]
    %v679 = vld [vmem:[#allocation2 + $0x1430] sm:$0xff]
    %v680 = vld [vmem:[#allocation2 + $0x1438] sm:$0xff]
    %v681 = vld [vmem:[#allocation2 + $0x1440] sm:$0xff]
    %v682 = vld [vmem:[#allocation2 + $0x1448] sm:$0xff]
    %v683 = vld [vmem:[#allocation2 + $0x1450] sm:$0xff]
    %v684 = vld [vmem:[#allocation2 + $0x1458] sm:$0xff]
    %v685 = vld [vmem:[#allocation2 + $0x1460] sm:$0xff]
    %v686 = vld [vmem:[#allocation2 + $0x1468] sm:$0xff]
    %v687 = vld [vmem:[#allocation2 + $0x1470] sm:$0xff]
    %v688 = vld [vmem:[#allocation2 + $0x1478] sm:$0xff]
    %v689 = vld [vmem:[#allocation2 + $0x1480] sm:$0xff]
    %v690 = vld [vmem:[#allocation2 + $0x1488] sm:$0xff]
    %v691 = vld [vmem:[#allocation2 + $0x1490] sm:$0xff]
    %v692 = vld [vmem:[#allocation2 + $0x1498] sm:$0xff]
    %v693 = vld [vmem:[#allocation2 + $0x14a0] sm:$0xff]
    %v694 = vld [vmem:[#allocation2 + $0x14a8] sm:$0xff]
    %v695 = vld [vmem:[#allocation2 + $0x14b0] sm:$0xff]
    %v696 = vld [vmem:[#allocation2 + $0x14b8] sm:$0xff]
    %v697 = vld [vmem:[#allocation2 + $0x14c0] sm:$0xff]
    %v698 = vld [vmem:[#allocation2 + $0x14c8] sm:$0xff]
    %v699 = vld [vmem:[#allocation2 + $0x14d0] sm:$0xff]
    %v700 = vld [vmem:[#allocation2 + $0x14d8] sm:$0xff]
    %v701 = vld [vmem:[#allocation2 + $0x14e0] sm:$0xff]
    %v702 = vld [vmem:[#allocation2 + $0x14e8] sm:$0xff]
    %v703 = vld [vmem:[#allocation2 + $0x14f0] sm:$0xff]
    %v704 = vld [vmem:[#allocation2 + $0x14f8] sm:$0xff]
    %v705 = vld [vmem:[#allocation2 + $0x1500] sm:$0xff]
    %v706 = vld [vmem:[#allocation2 + $0x1508] sm:$0xff]
    %v707 = vld [vmem:[#allocation2 + $0x1510] sm:$0xff]
    %v708 = vld [vmem:[#allocation2 + $0x1518] sm:$0xff]
    %v709 = vld [vmem:[#allocation2 + $0x1520] sm:$0xff]
    %v710 = vld [vmem:[#allocation2 + $0x1528] sm:$0xff]
    %v711 = vld [vmem:[#allocation2 + $0x1530] sm:$0xff]
    %v712 = vld [vmem:[#allocation2 + $0x1538] sm:$0xff]
    %v713 = vld [vmem:[#allocation2 + $0x1540] sm:$0xff]
    %v714 = vld [vmem:[#allocation2 + $0x1548] sm:$0xff]
    %v715 = vld [vmem:[#allocation2 + $0x1550] sm:$0xff]
    %v716 = vld [vmem:[#allocation2 + $0x1558] sm:$0xff]
    %v717 = vld [vmem:[#allocation2 + $0x1560] sm:$0xff]
    %v718 = vld [vmem:[#allocation2 + $0x1568] sm:$0xff]
    %v719 = vld [vmem:[#allocation2 + $0x1570] sm:$0xff]
    %v720 = vld [vmem:[#allocation2 + $0x1578] sm:$0xff]
    %v721 = vld [vmem:[#allocation2 + $0x1580] sm:$0xff]
    %v722 = vld [vmem:[#allocation2 + $0x1588] sm:$0xff]
    %v723 = vld [vmem:[#allocation2 + $0x1590] sm:$0xff]
    %v724 = vld [vmem:[#allocation2 + $0x1598] sm:$0xff]
    %v725 = vld [vmem:[#allocation2 + $0x15a0] sm:$0xff]
    %v726 = vld [vmem:[#allocation2 + $0x15a8] sm:$0xff]
    %v727 = vld [vmem:[#allocation2 + $0x15b0] sm:$0xff]
    %v728 = vld [vmem:[#allocation2 + $0x15b8] sm:$0xff]
    %v729 = vld [vmem:[#allocation2 + $0x15c0] sm:$0xff]
    %v730 = vld [vmem:[#allocation2 + $0x15c8] sm:$0xff]
    %v731 = vld [vmem:[#allocation2 + $0x15d0] sm:$0xff]
    %v732 = vld [vmem:[#allocation2 + $0x15d8] sm:$0xff]
    %v733 = vld [vmem:[#allocation2 + $0x15e0] sm:$0xff]
    %v734 = vld [vmem:[#allocation2 + $0x15e8] sm:$0xff]
    %v735 = vld [vmem:[#allocation2 + $0x15f0] sm:$0xff]
    %v736 = vld [vmem:[#allocation2 + $0x15f8] sm:$0xff]
    %v737 = vld [vmem:[#allocation2 + $0x1600] sm:$0xff]
    %v738 = vld [vmem:[#allocation2 + $0x1608] sm:$0xff]
    %v739 = vld [vmem:[#allocation2 + $0x1610] sm:$0xff]
    %v740 = vld [vmem:[#allocation2 + $0x1618] sm:$0xff]
    %v741 = vld [vmem:[#allocation2 + $0x1620] sm:$0xff]
    %v742 = vld [vmem:[#allocation2 + $0x1628] sm:$0xff]
    %v743 = vld [vmem:[#allocation2 + $0x1630] sm:$0xff]
    %v744 = vld [vmem:[#allocation2 + $0x1638] sm:$0xff]
    %v745 = vld [vmem:[#allocation2 + $0x1640] sm:$0xff]
    %v746 = vld [vmem:[#allocation2 + $0x1648] sm:$0xff]
    %v747 = vld [vmem:[#allocation2 + $0x1650] sm:$0xff]
    %v748 = vld [vmem:[#allocation2 + $0x1658] sm:$0xff]
    %v749 = vld [vmem:[#allocation2 + $0x1660] sm:$0xff]
    %v750 = vld [vmem:[#allocation2 + $0x1668] sm:$0xff]
    %v751 = vld [vmem:[#allocation2 + $0x1670] sm:$0xff]
    %v752 = vld [vmem:[#allocation2 + $0x1678] sm:$0xff]
    %v753 = vld [vmem:[#allocation2 + $0x1680] sm:$0xff]
    %v754 = vld [vmem:[#allocation2 + $0x1688] sm:$0xff]
    %v755 = vld [vmem:[#allocation2 + $0x1690] sm:$0xff]
    %v756 = vld [vmem:[#allocation2 + $0x1698] sm:$0xff]
    %v757 = vld [vmem:[#allocation2 + $0x16a0] sm:$0xff]
    %v758 = vld [vmem:[#allocation2 + $0x16a8] sm:$0xff]
    %v759 = vld [vmem:[#allocation2 + $0x16b0] sm:$0xff]
    %v760 = vld [vmem:[#allocation2 + $0x16b8] sm:$0xff]
    %v761 = vld [vmem:[#allocation2 + $0x16c0] sm:$0xff]
    %v762 = vld [vmem:[#allocation2 + $0x16c8] sm:$0xff]
    %v763 = vld [vmem:[#allocation2 + $0x16d0] sm:$0xff]
    %v764 = vld [vmem:[#allocation2 + $0x16d8] sm:$0xff]
    %v765 = vld [vmem:[#allocation2 + $0x16e0] sm:$0xff]
    %v766 = vld [vmem:[#allocation2 + $0x16e8] sm:$0xff]
    %v767 = vld [vmem:[#allocation2 + $0x16f0] sm:$0xff]
    %v768 = vld [vmem:[#allocation2 + $0x16f8] sm:$0xff]
    %v769 = vld [vmem:[#allocation2 + $0x1700] sm:$0xff]
    %v770 = vld [vmem:[#allocation2 + $0x1708] sm:$0xff]
    %v771 = vld [vmem:[#allocation2 + $0x1710] sm:$0xff]
    %v772 = vld [vmem:[#allocation2 + $0x1718] sm:$0xff]
    %v773 = vld [vmem:[#allocation2 + $0x1720] sm:$0xff]
    %v774 = vld [vmem:[#allocation2 + $0x1728] sm:$0xff]
    %v775 = vld [vmem:[#allocation2 + $0x1730] sm:$0xff]
    %v776 = vld [vmem:[#allocation2 + $0x1738] sm:$0xff]
    %v777 = vld [vmem:[#allocation2 + $0x1740] sm:$0xff]
    %v778 = vld [vmem:[#allocation2 + $0x1748] sm:$0xff]
    %v779 = vld [vmem:[#allocation2 + $0x1750] sm:$0xff]
    %v780 = vld [vmem:[#allocation2 + $0x1758] sm:$0xff]
    %v781 = vld [vmem:[#allocation2 + $0x1760] sm:$0xff]
    %v782 = vld [vmem:[#allocation2 + $0x1768] sm:$0xff]
    %v783 = vld [vmem:[#allocation2 + $0x1770] sm:$0xff]
    %v784 = vld [vmem:[#allocation2 + $0x1778] sm:$0xff]
    %v785 = vld [vmem:[#allocation2 + $0x1780] sm:$0xff]
    %v786 = vld [vmem:[#allocation2 + $0x1788] sm:$0xff]
    %v787 = vld [vmem:[#allocation2 + $0x1790] sm:$0xff]
    %v788 = vld [vmem:[#allocation2 + $0x1798] sm:$0xff]
    %v789 = vld [vmem:[#allocation2 + $0x17a0] sm:$0xff]
    %v790 = vld [vmem:[#allocation2 + $0x17a8] sm:$0xff]
    %v791 = vld [vmem:[#allocation2 + $0x17b0] sm:$0xff]
    %v792 = vld [vmem:[#allocation2 + $0x17b8] sm:$0xff]
    %v793 = vld [vmem:[#allocation2 + $0x17c0] sm:$0xff]
    %v794 = vld [vmem:[#allocation2 + $0x17c8] sm:$0xff]
    %v795 = vld [vmem:[#allocation2 + $0x17d0] sm:$0xff]
    %v796 = vld [vmem:[#allocation2 + $0x17d8] sm:$0xff]
    %v797 = vld [vmem:[#allocation2 + $0x17e0] sm:$0xff]
    %v798 = vld [vmem:[#allocation2 + $0x17e8] sm:$0xff]
    %v799 = vld [vmem:[#allocation2 + $0x17f0] sm:$0xff]
    %v800 = vld [vmem:[#allocation2 + $0x17f8] sm:$0xff]
    %v801 = vld [vmem:[#allocation2 + $0x1800] sm:$0xff]
    %v802 = vld [vmem:[#allocation2 + $0x1808] sm:$0xff]
    %v803 = vld [vmem:[#allocation2 + $0x1810] sm:$0xff]
    %v804 = vld [vmem:[#allocation2 + $0x1818] sm:$0xff]
    %v805 = vld [vmem:[#allocation2 + $0x1820] sm:$0xff]
    %v806 = vld [vmem:[#allocation2 + $0x1828] sm:$0xff]
    %v807 = vld [vmem:[#allocation2 + $0x1830] sm:$0xff]
    %v808 = vld [vmem:[#allocation2 + $0x1838] sm:$0xff]
    %v809 = vld [vmem:[#allocation2 + $0x1840] sm:$0xff]
    %v810 = vld [vmem:[#allocation2 + $0x1848] sm:$0xff]
    %v811 = vld [vmem:[#allocation2 + $0x1850] sm:$0xff]
    %v812 = vld [vmem:[#allocation2 + $0x1858] sm:$0xff]
    %v813 = vld [vmem:[#allocation2 + $0x1860] sm:$0xff]
    %v814 = vld [vmem:[#allocation2 + $0x1868] sm:$0xff]
    %v815 = vld [vmem:[#allocation2 + $0x1870] sm:$0xff]
    %v816 = vld [vmem:[#allocation2 + $0x1878] sm:$0xff]
    %v817 = vld [vmem:[#allocation2 + $0x1880] sm:$0xff]
    %v818 = vld [vmem:[#allocation2 + $0x1888] sm:$0xff]
    %v819 = vld [vmem:[#allocation2 + $0x1890] sm:$0xff]
    %v820 = vld [vmem:[#allocation2 + $0x1898] sm:$0xff]
    %v821 = vld [vmem:[#allocation2 + $0x18a0] sm:$0xff]
    %v822 = vld [vmem:[#allocation2 + $0x18a8] sm:$0xff]
    %v823 = vld [vmem:[#allocation2 + $0x18b0] sm:$0xff]
    %v824 = vld [vmem:[#allocation2 + $0x18b8] sm:$0xff]
    %v825 = vld [vmem:[#allocation2 + $0x18c0] sm:$0xff]
    %v826 = vld [vmem:[#allocation2 + $0x18c8] sm:$0xff]
    %v827 = vld [vmem:[#allocation2 + $0x18d0] sm:$0xff]
    %v828 = vld [vmem:[#allocation2 + $0x18d8] sm:$0xff]
    %v829 = vld [vmem:[#allocation2 + $0x18e0] sm:$0xff]
    %v830 = vld [vmem:[#allocation2 + $0x18e8] sm:$0xff]
    %v831 = vld [vmem:[#allocation2 + $0x18f0] sm:$0xff]
    %v832 = vld [vmem:[#allocation2 + $0x18f8] sm:$0xff]
    %v833 = vld [vmem:[#allocation2 + $0x1900] sm:$0xff]
    %v834 = vld [vmem:[#allocation2 + $0x1908] sm:$0xff]
    %v835 = vld [vmem:[#allocation2 + $0x1910] sm:$0xff]
    %v836 = vld [vmem:[#allocation2 + $0x1918] sm:$0xff]
    %v837 = vld [vmem:[#allocation2 + $0x1920] sm:$0xff]
    %v838 = vld [vmem:[#allocation2 + $0x1928] sm:$0xff]
    %v839 = vld [vmem:[#allocation2 + $0x1930] sm:$0xff]
    %v840 = vld [vmem:[#allocation2 + $0x1938] sm:$0xff]
    %v841 = vld [vmem:[#allocation2 + $0x1940] sm:$0xff]
    %v842 = vld [vmem:[#allocation2 + $0x1948] sm:$0xff]
    %v843 = vld [vmem:[#allocation2 + $0x1950] sm:$0xff]
    %v844 = vld [vmem:[#allocation2 + $0x1958] sm:$0xff]
    %v845 = vld [vmem:[#allocation2 + $0x1960] sm:$0xff]
    %v846 = vld [vmem:[#allocation2 + $0x1968] sm:$0xff]
    %v847 = vld [vmem:[#allocation2 + $0x1970] sm:$0xff]
    %v848 = vld [vmem:[#allocation2 + $0x1978] sm:$0xff]
    %v849 = vld [vmem:[#allocation2 + $0x1980] sm:$0xff]
    %v850 = vld [vmem:[#allocation2 + $0x1988] sm:$0xff]
    %v851 = vld [vmem:[#allocation2 + $0x1990] sm:$0xff]
    %v852 = vld [vmem:[#allocation2 + $0x1998] sm:$0xff]
    %v853 = vld [vmem:[#allocation2 + $0x19a0] sm:$0xff]
    %v854 = vld [vmem:[#allocation2 + $0x19a8] sm:$0xff]
    %v855 = vld [vmem:[#allocation2 + $0x19b0] sm:$0xff]
    %v856 = vld [vmem:[#allocation2 + $0x19b8] sm:$0xff]
    %v857 = vld [vmem:[#allocation2 + $0x19c0] sm:$0xff]
    %v858 = vld [vmem:[#allocation2 + $0x19c8] sm:$0xff]
    %v859 = vld [vmem:[#allocation2 + $0x19d0] sm:$0xff]
    %v860 = vld [vmem:[#allocation2 + $0x19d8] sm:$0xff]
    %v861 = vld [vmem:[#allocation2 + $0x19e0] sm:$0xff]
    %v862 = vld [vmem:[#allocation2 + $0x19e8] sm:$0xff]
    %v863 = vld [vmem:[#allocation2 + $0x19f0] sm:$0xff]
    %v864 = vld [vmem:[#allocation2 + $0x19f8] sm:$0xff]
    %v865 = vld [vmem:[#allocation2 + $0x1a00] sm:$0xff]
    %v866 = vld [vmem:[#allocation2 + $0x1a08] sm:$0xff]
    %v867 = vld [vmem:[#allocation2 + $0x1a10] sm:$0xff]
    %v868 = vld [vmem:[#allocation2 + $0x1a18] sm:$0xff]
    %v869 = vld [vmem:[#allocation2 + $0x1a20] sm:$0xff]
    %v870 = vld [vmem:[#allocation2 + $0x1a28] sm:$0xff]
    %v871 = vld [vmem:[#allocation2 + $0x1a30] sm:$0xff]
    %v872 = vld [vmem:[#allocation2 + $0x1a38] sm:$0xff]
    %vm873 = vcmask 523264
    %v875 = vsel %vm873, %v32, 0
    %877 = vmatprep.subr.mxu0 %v34
    %878 = vmatpush1.msra.mxu0 %v33
    %879 = vmatprep.subr.mxu0 %v41
    %880 = vmatpush1.msra.mxu0 %v40
    %881 = vmatprep.subr.mxu0 %v48
    %882 = vmatpush1.msra.mxu0 %v47
    %883 = vmatprep.subr.mxu0 %v55
    %884 = vmatpush1.msra.mxu0 %v54
    %885 = vmatprep.subr.mxu0 %v62
    %886 = vmatpush1.msra.mxu0 %v61
    %887 = vmatprep.subr.mxu0 %v69
    %888 = vmatpush1.msra.mxu0 %v68
    %889 = vmatprep.subr.mxu0 %v76
    %890 = vmatpush1.msra.mxu0 %v75
    %891 = vmatprep.subr.mxu0 %v83
    %892 = vmatpush1.msra.mxu0 %v82
    %893 = vmatprep.subr.mxu0 %v90
    %894 = vmatpush1.msra.mxu0 %v89
    %895 = vmatprep.subr.mxu0 %v97
    %896 = vmatpush1.msra.mxu0 %v96
    %897 = vmatprep.subr.mxu0 %v104
    %898 = vmatpush1.msra.mxu0 %v103
    %899 = vmatprep.subr.mxu0 %v111
    %900 = vmatpush1.msra.mxu0 %v110
    %901 = vmatprep.subr.mxu0 %v118
    %902 = vmatpush1.msra.mxu0 %v117
    %903 = vmatprep.subr.mxu0 %v125
    %904 = vmatpush1.msra.mxu0 %v124
    %905 = vmatprep.subr.mxu0 %v132
    %906 = vmatpush1.msra.mxu0 %v131
    %907 = vmatprep.subr.mxu0 %v139
    %908 = vmatpush1.msra.mxu0 %v138
    %909 = vmatprep.subr.mxu0 %v146
    %910 = vmatpush1.msra.mxu0 %v145
    %911 = vmatprep.subr.mxu0 %v153
    %912 = vmatpush1.msra.mxu0 %v152
    %913 = vmatprep.subr.mxu0 %v160
    %914 = vmatpush1.msra.mxu0 %v159
    %915 = vmatprep.subr.mxu0 %v167
    %916 = vmatpush1.msra.mxu0 %v166
    %917 = vmatprep.subr.mxu0 %v174
    %918 = vmatpush1.msra.mxu0 %v173
    %919 = vmatprep.subr.mxu0 %v181
    %920 = vmatpush1.msra.mxu0 %v180
    %921 = vmatprep.subr.mxu0 %v188
    %922 = vmatpush1.msra.mxu0 %v187
    %923 = vmatprep.subr.mxu0 %v195
    %924 = vmatpush1.msra.mxu0 %v194
    %925 = vmatprep.subr.mxu0 %v202
    %926 = vmatpush1.msra.mxu0 %v201
    %927 = vmatprep.subr.mxu0 %v209
    %928 = vmatpush1.msra.mxu0 %v208
    %929 = vmatprep.subr.mxu0 %v216
    %930 = vmatpush1.msra.mxu0 %v215
    %931 = vmatprep.subr.mxu0 %v223
    %932 = vmatpush1.msra.mxu0 %v222
    %933 = vmatprep.subr.mxu0 %v230
    %934 = vmatpush1.msra.mxu0 %v229
    %935 = vmatprep.subr.mxu0 %v237
    %936 = vmatpush1.msra.mxu0 %v236
    %937 = vmatprep.subr.mxu0 %v244
    %938 = vmatpush1.msra.mxu0 %v243
    %939 = vmatprep.subr.mxu0 %v251
    %940 = vmatpush1.msra.mxu0 %v250
    %941 = vmatprep.mubr.f32.mxu0 %v26
    %942 = vmatmul.mubr.f32.gmra.mrb[0].mxu0 %v25
    %v943 = vpop.f32.mrb[0].mxu0
    %v944 = vadd.f32 0.0, %v943
    %v945 = vpop.f32.mrb[0].mxu0
    %v946 = vadd.f32 0.0, %v945
    %947 = vdwg.mxu0
    %948 = vmatprep.subr.mxu0 %v258
    %949 = vmatpush1.msra.mxu0 %v257
    %950 = vmatprep.subr.mxu0 %v265
    %951 = vmatpush1.msra.mxu0 %v264
    %952 = vmatprep.subr.mxu0 %v272
    %953 = vmatpush1.msra.mxu0 %v271
    %954 = vmatprep.subr.mxu0 %v279
    %955 = vmatpush1.msra.mxu0 %v278
    %956 = vmatprep.subr.mxu0 %v286
    %957 = vmatpush1.msra.mxu0 %v285
    %958 = vmatprep.subr.mxu0 %v293
    %959 = vmatpush1.msra.mxu0 %v292
    %960 = vmatprep.subr.mxu0 %v300
    %961 = vmatpush1.msra.mxu0 %v299
    %962 = vmatprep.subr.mxu0 %v307
    %963 = vmatpush1.msra.mxu0 %v306
    %964 = vmatprep.subr.mxu0 %v314
    %965 = vmatpush1.msra.mxu0 %v313
    %966 = vmatprep.subr.mxu0 %v321
    %967 = vmatpush1.msra.mxu0 %v320
    %968 = vmatprep.subr.mxu0 %v328
    %969 = vmatpush1.msra.mxu0 %v327
    %970 = vmatprep.subr.mxu0 %v335
    %971 = vmatpush1.msra.mxu0 %v334
    %972 = vmatprep.subr.mxu0 %v342
    %973 = vmatpush1.msra.mxu0 %v341
    %974 = vmatprep.subr.mxu0 %v349
    %975 = vmatpush1.msra.mxu0 %v348
    %976 = vmatprep.subr.mxu0 %v356
    %977 = vmatpush1.msra.mxu0 %v355
    %978 = vmatprep.subr.mxu0 %v363
    %979 = vmatpush1.msra.mxu0 %v362
    %980 = vmatprep.subr.mxu0 %v370
    %981 = vmatpush1.msra.mxu0 %v369
    %982 = vmatprep.subr.mxu0 %v377
    %983 = vmatpush1.msra.mxu0 %v376
    %984 = vmatprep.subr.mxu0 %v384
    %985 = vmatpush1.msra.mxu0 %v383
    %986 = vmatprep.subr.mxu0 %v391
    %987 = vmatpush1.msra.mxu0 %v390
    %988 = vmatprep.subr.mxu0 %v398
    %989 = vmatpush1.msra.mxu0 %v397
    %990 = vmatprep.subr.mxu0 %v405
    %991 = vmatpush1.msra.mxu0 %v404
    %992 = vmatprep.subr.mxu0 %v412
    %993 = vmatpush1.msra.mxu0 %v411
    %994 = vmatprep.subr.mxu0 %v419
    %995 = vmatpush1.msra.mxu0 %v418
    %996 = vmatprep.subr.mxu0 %v426
    %997 = vmatpush1.msra.mxu0 %v425
    %998 = vmatprep.subr.mxu0 %v433
    %999 = vmatpush1.msra.mxu0 %v432
    %1000 = vmatprep.subr.mxu0 %v440
    %1001 = vmatpush1.msra.mxu0 %v439
    %1002 = vmatprep.subr.mxu0 %v447
    %1003 = vmatpush1.msra.mxu0 %v446
    %1004 = vmatprep.subr.mxu0 %v454
    %1005 = vmatpush1.msra.mxu0 %v453
    %1006 = vmatprep.subr.mxu0 %v461
    %1007 = vmatpush1.msra.mxu0 %v460
    %1008 = vmatprep.subr.mxu0 %v468
    %1009 = vmatpush1.msra.mxu0 %v467
    %1010 = vmatprep.subr.mxu0 %v475
    %1011 = vmatpush1.msra.mxu0 %v474
    %1012 = vmatprep.mubr.f32.mxu0 %v28
    %1013 = vmatmul.mubr.f32.gmra.mrb[0].mxu0 %v27
    %v1014 = vpop.f32.mrb[0].mxu0
    %v1015 = vadd.f32 %v944, %v1014
    %v1016 = vpop.f32.mrb[0].mxu0
    %v1017 = vadd.f32 %v946, %v1016
    %1018 = vdwg.mxu0
    %1019 = vmatprep.subr.mxu0 %v482
    %1020 = vmatpush1.msra.mxu0 %v481
    %1021 = vmatprep.subr.mxu0 %v489
    %1022 = vmatpush1.msra.mxu0 %v488
    %1023 = vmatprep.subr.mxu0 %v496
    %1024 = vmatpush1.msra.mxu0 %v495
    %1025 = vmatprep.subr.mxu0 %v503
    %1026 = vmatpush1.msra.mxu0 %v502
    %1027 = vmatprep.subr.mxu0 %v510
    %1028 = vmatpush1.msra.mxu0 %v509
    %1029 = vmatprep.subr.mxu0 %v517
    %1030 = vmatpush1.msra.mxu0 %v516
    %1031 = vmatprep.subr.mxu0 %v524
    %1032 = vmatpush1.msra.mxu0 %v523
    %1033 = vmatprep.subr.mxu0 %v531
    %1034 = vmatpush1.msra.mxu0 %v530
    %1035 = vmatprep.subr.mxu0 %v538
    %1036 = vmatpush1.msra.mxu0 %v537
    %1037 = vmatprep.subr.mxu0 %v545
    %1038 = vmatpush1.msra.mxu0 %v544
    %1039 = vmatprep.subr.mxu0 %v552
    %1040 = vmatpush1.msra.mxu0 %v551
    %1041 = vmatprep.subr.mxu0 %v559
    %1042 = vmatpush1.msra.mxu0 %v558
    %1043 = vmatprep.subr.mxu0 %v566
    %1044 = vmatpush1.msra.mxu0 %v565
    %1045 = vmatprep.subr.mxu0 %v573
    %1046 = vmatpush1.msra.mxu0 %v572
    %1047 = vmatprep.subr.mxu0 %v580
    %1048 = vmatpush1.msra.mxu0 %v579
    %1049 = vmatprep.subr.mxu0 %v587
    %1050 = vmatpush1.msra.mxu0 %v586
    %1051 = vmatprep.subr.mxu0 %v594
    %1052 = vmatpush1.msra.mxu0 %v593
    %1053 = vmatprep.subr.mxu0 %v601
    %1054 = vmatpush1.msra.mxu0 %v600
    %1055 = vmatprep.subr.mxu0 %v608
    %1056 = vmatpush1.msra.mxu0 %v607
    %1057 = vmatprep.subr.mxu0 %v615
    %1058 = vmatpush1.msra.mxu0 %v614
    %1059 = vmatprep.subr.mxu0 %v622
    %1060 = vmatpush1.msra.mxu0 %v621
    %1061 = vmatprep.subr.mxu0 %v629
    %1062 = vmatpush1.msra.mxu0 %v628
    %1063 = vmatprep.subr.mxu0 %v636
    %1064 = vmatpush1.msra.mxu0 %v635
    %1065 = vmatprep.subr.mxu0 %v643
    %1066 = vmatpush1.msra.mxu0 %v642
    %1067 = vmatprep.subr.mxu0 %v650
    %1068 = vmatpush1.msra.mxu0 %v649
    %1069 = vmatprep.subr.mxu0 %v657
    %1070 = vmatpush1.msra.mxu0 %v656
    %1071 = vmatprep.subr.mxu0 %v664
    %1072 = vmatpush1.msra.mxu0 %v663
    %1073 = vmatprep.subr.mxu0 %v671
    %1074 = vmatpush1.msra.mxu0 %v670
    %1075 = vmatprep.subr.mxu0 %v678
    %1076 = vmatpush1.msra.mxu0 %v677
    %1077 = vmatprep.subr.mxu0 %v685
    %1078 = vmatpush1.msra.mxu0 %v684
    %1079 = vmatprep.subr.mxu0 %v692
    %1080 = vmatpush1.msra.mxu0 %v691
    %1081 = vmatprep.subr.mxu0 %v699
    %1082 = vmatpush1.msra.mxu0 %v698
    %1083 = vmatprep.mubr.f32.mxu0 %v30
    %1084 = vmatmul.mubr.f32.gmra.mrb[0].mxu0 %v29
    %v1085 = vpop.f32.mrb[0].mxu0
    %v1086 = vadd.f32 %v1015, %v1085
    %v1087 = vpop.f32.mrb[0].mxu0
    %v1088 = vadd.f32 %v1017, %v1087
    %1089 = vdwg.mxu0
    %1090 = vmatprep.subr.mxu0 %v706
    %1091 = vmatpush1.msra.mxu0 %v705
    %1092 = vmatprep.subr.mxu0 %v713
    %1093 = vmatpush1.msra.mxu0 %v712
    %1094 = vmatprep.subr.mxu0 %v720
    %1095 = vmatpush1.msra.mxu0 %v719
    %1096 = vmatprep.subr.mxu0 %v727
    %1097 = vmatpush1.msra.mxu0 %v726
    %1098 = vmatprep.subr.mxu0 %v734
    %1099 = vmatpush1.msra.mxu0 %v733
    %1100 = vmatprep.subr.mxu0 %v741
    %1101 = vmatpush1.msra.mxu0 %v740
    %1102 = vmatprep.subr.mxu0 %v748
    %1103 = vmatpush1.msra.mxu0 %v747
    %1104 = vmatprep.subr.mxu0 %v755
    %1105 = vmatpush1.msra.mxu0 %v754
    %1106 = vmatprep.subr.mxu0 %v762
    %1107 = vmatpush1.msra.mxu0 %v761
    %1108 = vmatprep.subr.mxu0 %v769
    %1109 = vmatpush1.msra.mxu0 %v768
    %1110 = vmatprep.subr.mxu0 %v776
    %1111 = vmatpush1.msra.mxu0 %v775
    %1112 = vmatprep.subr.mxu0 %v783
    %1113 = vmatpush1.msra.mxu0 %v782
    %1114 = vmatprep.subr.mxu0 %v790
    %1115 = vmatpush1.msra.mxu0 %v789
    %1116 = vmatprep.subr.mxu0 %v797
    %1117 = vmatpush1.msra.mxu0 %v796
    %1118 = vmatprep.subr.mxu0 %v804
    %1119 = vmatpush1.msra.mxu0 %v803
    %1120 = vmatprep.subr.mxu0 %v811
    %1121 = vmatpush1.msra.mxu0 %v810
    %1122 = vmatprep.subr.mxu0 %v818
    %1123 = vmatpush1.msra.mxu0 %v817
    %1124 = vmatprep.subr.mxu0 %v825
    %1125 = vmatpush1.msra.mxu0 %v824
    %1126 = vmatprep.subr.mxu0 %v832
    %1127 = vmatpush1.msra.mxu0 %v831
    %1128 = vmatprep.subr.mxu0 %v839
    %1129 = vmatpush1.msra.mxu0 %v838
    %1130 = vmatprep.subr.mxu0 %v846
    %1131 = vmatpush1.msra.mxu0 %v845
    %1132 = vmatprep.subr.mxu0 %v853
    %1133 = vmatpush1.msra.mxu0 %v852
    %1134 = vmatprep.subr.mxu0 %v860
    %1135 = vmatpush1.msra.mxu0 %v859
    %1136 = vmatprep.subr.mxu0 %v867
    %1137 = vmatpush1.msra.mxu0 %v866
    %1138 = vmatprep.subr.mxu0 0.0
    %1139 = vmatpush1.msra.mxu0 0.0
    %1140 = vmatprep.subr.mxu0 0.0
    %1141 = vmatpush1.msra.mxu0 0.0
    %1142 = vmatprep.subr.mxu0 0.0
    %1143 = vmatpush1.msra.mxu0 0.0
    %1144 = vmatprep.subr.mxu0 0.0
    %1145 = vmatpush1.msra.mxu0 0.0
    %1146 = vmatprep.subr.mxu0 0.0
    %1147 = vmatpush1.msra.mxu0 0.0
    %1148 = vmatprep.subr.mxu0 0.0
    %1149 = vmatpush1.msra.mxu0 0.0
    %1150 = vmatprep.subr.mxu0 0.0
    %1151 = vmatpush1.msra.mxu0 0.0
    %1152 = vmatprep.subr.mxu0 0.0
    %1153 = vmatpush1.msra.mxu0 0.0
    %1154 = vmatprep.mubr.f32.mxu0 %v875
    %1155 = vmatmul.mubr.f32.gmra.mrb[0].mxu0 %v31
    %v1156 = vpop.f32.mrb[0].mxu0
    %v1157 = vadd.f32 %v1086, %v1156
    %v1158 = vpop.f32.mrb[0].mxu0
    %v1159 = vadd.f32 %v1088, %v1158
    %1160 = vdwg.mxu0
    %1161 = vmatprep.subr.mxu0 %v36
    %1162 = vmatpush1.msra.mxu0 %v35
    %1163 = vmatprep.subr.mxu0 %v43
    %1164 = vmatpush1.msra.mxu0 %v42
    %1165 = vmatprep.subr.mxu0 %v50
    %1166 = vmatpush1.msra.mxu0 %v49
    %1167 = vmatprep.subr.mxu0 %v57
    %1168 = vmatpush1.msra.mxu0 %v56
    %1169 = vmatprep.subr.mxu0 %v64
    %1170 = vmatpush1.msra.mxu0 %v63
    %1171 = vmatprep.subr.mxu0 %v71
    %1172 = vmatpush1.msra.mxu0 %v70
    %1173 = vmatprep.subr.mxu0 %v78
    %1174 = vmatpush1.msra.mxu0 %v77
    %1175 = vmatprep.subr.mxu0 %v85
    %1176 = vmatpush1.msra.mxu0 %v84
    %1177 = vmatprep.subr.mxu0 %v92
    %1178 = vmatpush1.msra.mxu0 %v91
    %1179 = vmatprep.subr.mxu0 %v99
    %1180 = vmatpush1.msra.mxu0 %v98
    %1181 = vmatprep.subr.mxu0 %v106
    %1182 = vmatpush1.msra.mxu0 %v105
    %1183 = vmatprep.subr.mxu0 %v113
    %1184 = vmatpush1.msra.mxu0 %v112
    %1185 = vmatprep.subr.mxu0 %v120
    %1186 = vmatpush1.msra.mxu0 %v119
    %1187 = vmatprep.subr.mxu0 %v127
    %1188 = vmatpush1.msra.mxu0 %v126
    %1189 = vmatprep.subr.mxu0 %v134
    %1190 = vmatpush1.msra.mxu0 %v133
    %1191 = vmatprep.subr.mxu0 %v141
    %1192 = vmatpush1.msra.mxu0 %v140
    %1193 = vmatprep.subr.mxu0 %v148
    %1194 = vmatpush1.msra.mxu0 %v147
    %1195 = vmatprep.subr.mxu0 %v155
    %1196 = vmatpush1.msra.mxu0 %v154
    %1197 = vmatprep.subr.mxu0 %v162
    %1198 = vmatpush1.msra.mxu0 %v161
    %1199 = vmatprep.subr.mxu0 %v169
    %1200 = vmatpush1.msra.mxu0 %v168
    %1201 = vmatprep.subr.mxu0 %v176
    %1202 = vmatpush1.msra.mxu0 %v175
    %1203 = vmatprep.subr.mxu0 %v183
    %1204 = vmatpush1.msra.mxu0 %v182
    %1205 = vmatprep.subr.mxu0 %v190
    %1206 = vmatpush1.msra.mxu0 %v189
    %1207 = vmatprep.subr.mxu0 %v197
    %1208 = vmatpush1.msra.mxu0 %v196
    %1209 = vmatprep.subr.mxu0 %v204
    %1210 = vmatpush1.msra.mxu0 %v203
    %1211 = vmatprep.subr.mxu0 %v211
    %1212 = vmatpush1.msra.mxu0 %v210
    %1213 = vmatprep.subr.mxu0 %v218
    %1214 = vmatpush1.msra.mxu0 %v217
    %1215 = vmatprep.subr.mxu0 %v225
    %1216 = vmatpush1.msra.mxu0 %v224
    %1217 = vmatprep.subr.mxu0 %v232
    %1218 = vmatpush1.msra.mxu0 %v231
    %1219 = vmatprep.subr.mxu0 %v239
    %1220 = vmatpush1.msra.mxu0 %v238
    %1221 = vmatprep.subr.mxu0 %v246
    %1222 = vmatpush1.msra.mxu0 %v245
    %1223 = vmatprep.subr.mxu0 %v253
    %1224 = vmatpush1.msra.mxu0 %v252
    %1225 = vmatprep.mubr.f32.mxu0 %v26
    %1226 = vmatmul.mubr.f32.gmra.mrb[0].mxu0 %v25
    %v1227 = vpop.f32.mrb[0].mxu0
    %v1228 = vadd.f32 0.0, %v1227
    %v1229 = vpop.f32.mrb[0].mxu0
    %v1230 = vadd.f32 0.0, %v1229
    %1231 = vdwg.mxu0
    %1232 = vmatprep.subr.mxu0 %v260
    %1233 = vmatpush1.msra.mxu0 %v259
    %1234 = vmatprep.subr.mxu0 %v267
    %1235 = vmatpush1.msra.mxu0 %v266
    %1236 = vmatprep.subr.mxu0 %v274
    %1237 = vmatpush1.msra.mxu0 %v273
    %1238 = vmatprep.subr.mxu0 %v281
    %1239 = vmatpush1.msra.mxu0 %v280
    %1240 = vmatprep.subr.mxu0 %v288
    %1241 = vmatpush1.msra.mxu0 %v287
    %1242 = vmatprep.subr.mxu0 %v295
    %1243 = vmatpush1.msra.mxu0 %v294
    %1244 = vmatprep.subr.mxu0 %v302
    %1245 = vmatpush1.msra.mxu0 %v301
    %1246 = vmatprep.subr.mxu0 %v309
    %1247 = vmatpush1.msra.mxu0 %v308
    %1248 = vmatprep.subr.mxu0 %v316
    %1249 = vmatpush1.msra.mxu0 %v315
    %1250 = vmatprep.subr.mxu0 %v323
    %1251 = vmatpush1.msra.mxu0 %v322
    %1252 = vmatprep.subr.mxu0 %v330
    %1253 = vmatpush1.msra.mxu0 %v329
    %1254 = vmatprep.subr.mxu0 %v337
    %1255 = vmatpush1.msra.mxu0 %v336
    %1256 = vmatprep.subr.mxu0 %v344
    %1257 = vmatpush1.msra.mxu0 %v343
    %1258 = vmatprep.subr.mxu0 %v351
    %1259 = vmatpush1.msra.mxu0 %v350
    %1260 = vmatprep.subr.mxu0 %v358
    %1261 = vmatpush1.msra.mxu0 %v357
    %1262 = vmatprep.subr.mxu0 %v365
    %1263 = vmatpush1.msra.mxu0 %v364
    %1264 = vmatprep.subr.mxu0 %v372
    %1265 = vmatpush1.msra.mxu0 %v371
    %1266 = vmatprep.subr.mxu0 %v379
    %1267 = vmatpush1.msra.mxu0 %v378
    %1268 = vmatprep.subr.mxu0 %v386
    %1269 = vmatpush1.msra.mxu0 %v385
    %1270 = vmatprep.subr.mxu0 %v393
    %1271 = vmatpush1.msra.mxu0 %v392
    %1272 = vmatprep.subr.mxu0 %v400
    %1273 = vmatpush1.msra.mxu0 %v399
    %1274 = vmatprep.subr.mxu0 %v407
    %1275 = vmatpush1.msra.mxu0 %v406
    %1276 = vmatprep.subr.mxu0 %v414
    %1277 = vmatpush1.msra.mxu0 %v413
    %1278 = vmatprep.subr.mxu0 %v421
    %1279 = vmatpush1.msra.mxu0 %v420
    %1280 = vmatprep.subr.mxu0 %v428
    %1281 = vmatpush1.msra.mxu0 %v427
    %1282 = vmatprep.subr.mxu0 %v435
    %1283 = vmatpush1.msra.mxu0 %v434
    %1284 = vmatprep.subr.mxu0 %v442
    %1285 = vmatpush1.msra.mxu0 %v441
    %1286 = vmatprep.subr.mxu0 %v449
    %1287 = vmatpush1.msra.mxu0 %v448
    %1288 = vmatprep.subr.mxu0 %v456
    %1289 = vmatpush1.msra.mxu0 %v455
    %1290 = vmatprep.subr.mxu0 %v463
    %1291 = vmatpush1.msra.mxu0 %v462
    %1292 = vmatprep.subr.mxu0 %v470
    %1293 = vmatpush1.msra.mxu0 %v469
    %1294 = vmatprep.subr.mxu0 %v477
    %1295 = vmatpush1.msra.mxu0 %v476
    %1296 = vmatprep.mubr.f32.mxu0 %v28
    %1297 = vmatmul.mubr.f32.gmra.mrb[0].mxu0 %v27
    %v1298 = vpop.f32.mrb[0].mxu0
    %v1299 = vadd.f32 %v1228, %v1298
    %v1300 = vpop.f32.mrb[0].mxu0
    %v1301 = vadd.f32 %v1230, %v1300
    %1302 = vdwg.mxu0
    %1303 = vmatprep.subr.mxu0 %v484
    %1304 = vmatpush1.msra.mxu0 %v483
    %1305 = vmatprep.subr.mxu0 %v491
    %1306 = vmatpush1.msra.mxu0 %v490
    %1307 = vmatprep.subr.mxu0 %v498
    %1308 = vmatpush1.msra.mxu0 %v497
    %1309 = vmatprep.subr.mxu0 %v505
    %1310 = vmatpush1.msra.mxu0 %v504
    %1311 = vmatprep.subr.mxu0 %v512
    %1312 = vmatpush1.msra.mxu0 %v511
    %1313 = vmatprep.subr.mxu0 %v519
    %1314 = vmatpush1.msra.mxu0 %v518
    %1315 = vmatprep.subr.mxu0 %v526
    %1316 = vmatpush1.msra.mxu0 %v525
    %1317 = vmatprep.subr.mxu0 %v533
    %1318 = vmatpush1.msra.mxu0 %v532
    %1319 = vmatprep.subr.mxu0 %v540
    %1320 = vmatpush1.msra.mxu0 %v539
    %1321 = vmatprep.subr.mxu0 %v547
    %1322 = vmatpush1.msra.mxu0 %v546
    %1323 = vmatprep.subr.mxu0 %v554
    %1324 = vmatpush1.msra.mxu0 %v553
    %1325 = vmatprep.subr.mxu0 %v561
    %1326 = vmatpush1.msra.mxu0 %v560
    %1327 = vmatprep.subr.mxu0 %v568
    %1328 = vmatpush1.msra.mxu0 %v567
    %1329 = vmatprep.subr.mxu0 %v575
    %1330 = vmatpush1.msra.mxu0 %v574
    %1331 = vmatprep.subr.mxu0 %v582
    %1332 = vmatpush1.msra.mxu0 %v581
    %1333 = vmatprep.subr.mxu0 %v589
    %1334 = vmatpush1.msra.mxu0 %v588
    %1335 = vmatprep.subr.mxu0 %v596
    %1336 = vmatpush1.msra.mxu0 %v595
    %1337 = vmatprep.subr.mxu0 %v603
    %1338 = vmatpush1.msra.mxu0 %v602
    %1339 = vmatprep.subr.mxu0 %v610
    %1340 = vmatpush1.msra.mxu0 %v609
    %1341 = vmatprep.subr.mxu0 %v617
    %1342 = vmatpush1.msra.mxu0 %v616
    %1343 = vmatprep.subr.mxu0 %v624
    %1344 = vmatpush1.msra.mxu0 %v623
    %1345 = vmatprep.subr.mxu0 %v631
    %1346 = vmatpush1.msra.mxu0 %v630
    %1347 = vmatprep.subr.mxu0 %v638
    %1348 = vmatpush1.msra.mxu0 %v637
    %1349 = vmatprep.subr.mxu0 %v645
    %1350 = vmatpush1.msra.mxu0 %v644
    %1351 = vmatprep.subr.mxu0 %v652
    %1352 = vmatpush1.msra.mxu0 %v651
    %1353 = vmatprep.subr.mxu0 %v659
    %1354 = vmatpush1.msra.mxu0 %v658
    %1355 = vmatprep.subr.mxu0 %v666
    %1356 = vmatpush1.msra.mxu0 %v665
    %1357 = vmatprep.subr.mxu0 %v673
    %1358 = vmatpush1.msra.mxu0 %v672
    %1359 = vmatprep.subr.mxu0 %v680
    %1360 = vmatpush1.msra.mxu0 %v679
    %1361 = vmatprep.subr.mxu0 %v687
    %1362 = vmatpush1.msra.mxu0 %v686
    %1363 = vmatprep.subr.mxu0 %v694
    %1364 = vmatpush1.msra.mxu0 %v693
    %1365 = vmatprep.subr.mxu0 %v701
    %1366 = vmatpush1.msra.mxu0 %v700
    %1367 = vmatprep.mubr.f32.mxu0 %v30
    %1368 = vmatmul.mubr.f32.gmra.mrb[0].mxu0 %v29
    %v1369 = vpop.f32.mrb[0].mxu0
    %v1370 = vadd.f32 %v1299, %v1369
    %v1371 = vpop.f32.mrb[0].mxu0
    %v1372 = vadd.f32 %v1301, %v1371
    %1373 = vdwg.mxu0
    %1374 = vmatprep.subr.mxu0 %v708
    %1375 = vmatpush1.msra.mxu0 %v707
    %1376 = vmatprep.subr.mxu0 %v715
    %1377 = vmatpush1.msra.mxu0 %v714
    %1378 = vmatprep.subr.mxu0 %v722
    %1379 = vmatpush1.msra.mxu0 %v721
    %1380 = vmatprep.subr.mxu0 %v729
    %1381 = vmatpush1.msra.mxu0 %v728
    %1382 = vmatprep.subr.mxu0 %v736
    %1383 = vmatpush1.msra.mxu0 %v735
    %1384 = vmatprep.subr.mxu0 %v743
    %1385 = vmatpush1.msra.mxu0 %v742
    %1386 = vmatprep.subr.mxu0 %v750
    %1387 = vmatpush1.msra.mxu0 %v749
    %1388 = vmatprep.subr.mxu0 %v757
    %1389 = vmatpush1.msra.mxu0 %v756
    %1390 = vmatprep.subr.mxu0 %v764
    %1391 = vmatpush1.msra.mxu0 %v763
    %1392 = vmatprep.subr.mxu0 %v771
    %1393 = vmatpush1.msra.mxu0 %v770
    %1394 = vmatprep.subr.mxu0 %v778
    %1395 = vmatpush1.msra.mxu0 %v777
    %1396 = vmatprep.subr.mxu0 %v785
    %1397 = vmatpush1.msra.mxu0 %v784
    %1398 = vmatprep.subr.mxu0 %v792
    %1399 = vmatpush1.msra.mxu0 %v791
    %1400 = vmatprep.subr.mxu0 %v799
    %1401 = vmatpush1.msra.mxu0 %v798
    %1402 = vmatprep.subr.mxu0 %v806
    %1403 = vmatpush1.msra.mxu0 %v805
    %1404 = vmatprep.subr.mxu0 %v813
    %1405 = vmatpush1.msra.mxu0 %v812
    %1406 = vmatprep.subr.mxu0 %v820
    %1407 = vmatpush1.msra.mxu0 %v819
    %1408 = vmatprep.subr.mxu0 %v827
    %1409 = vmatpush1.msra.mxu0 %v826
    %1410 = vmatprep.subr.mxu0 %v834
    %1411 = vmatpush1.msra.mxu0 %v833
    %1412 = vmatprep.subr.mxu0 %v841
    %1413 = vmatpush1.msra.mxu0 %v840
    %1414 = vmatprep.subr.mxu0 %v848
    %1415 = vmatpush1.msra.mxu0 %v847
    %1416 = vmatprep.subr.mxu0 %v855
    %1417 = vmatpush1.msra.mxu0 %v854
    %1418 = vmatprep.subr.mxu0 %v862
    %1419 = vmatpush1.msra.mxu0 %v861
    %1420 = vmatprep.subr.mxu0 %v869
    %1421 = vmatpush1.msra.mxu0 %v868
    %1422 = vmatprep.subr.mxu0 0.0
    %1423 = vmatpush1.msra.mxu0 0.0
    %1424 = vmatprep.subr.mxu0 0.0
    %1425 = vmatpush1.msra.mxu0 0.0
    %1426 = vmatprep.subr.mxu0 0.0
    %1427 = vmatpush1.msra.mxu0 0.0
    %1428 = vmatprep.subr.mxu0 0.0
    %1429 = vmatpush1.msra.mxu0 0.0
    %1430 = vmatprep.subr.mxu0 0.0
    %1431 = vmatpush1.msra.mxu0 0.0
    %1432 = vmatprep.subr.mxu0 0.0
    %1433 = vmatpush1.msra.mxu0 0.0
    %1434 = vmatprep.subr.mxu0 0.0
    %1435 = vmatpush1.msra.mxu0 0.0
    %1436 = vmatprep.subr.mxu0 0.0
    %1437 = vmatpush1.msra.mxu0 0.0
    %1438 = vmatprep.mubr.f32.mxu0 %v875
    %1439 = vmatmul.mubr.f32.gmra.mrb[0].mxu0 %v31
    %v1440 = vpop.f32.mrb[0].mxu0
    %v1441 = vadd.f32 %v1370, %v1440
    %v1442 = vpop.f32.mrb[0].mxu0
    %v1443 = vadd.f32 %v1372, %v1442
    %1444 = vdwg.mxu0
    %1445 = vmatprep.subr.mxu0 %v38
    %1446 = vmatpush1.msra.mxu0 %v37
    %1447 = vmatprep.subr.mxu0 %v45
    %1448 = vmatpush1.msra.mxu0 %v44
    %1449 = vmatprep.subr.mxu0 %v52
    %1450 = vmatpush1.msra.mxu0 %v51
    %1451 = vmatprep.subr.mxu0 %v59
    %1452 = vmatpush1.msra.mxu0 %v58
    %1453 = vmatprep.subr.mxu0 %v66
    %1454 = vmatpush1.msra.mxu0 %v65
    %1455 = vmatprep.subr.mxu0 %v73
    %1456 = vmatpush1.msra.mxu0 %v72
    %1457 = vmatprep.subr.mxu0 %v80
    %1458 = vmatpush1.msra.mxu0 %v79
    %1459 = vmatprep.subr.mxu0 %v87
    %1460 = vmatpush1.msra.mxu0 %v86
    %1461 = vmatprep.subr.mxu0 %v94
    %1462 = vmatpush1.msra.mxu0 %v93
    %1463 = vmatprep.subr.mxu0 %v101
    %1464 = vmatpush1.msra.mxu0 %v100
    %1465 = vmatprep.subr.mxu0 %v108
    %1466 = vmatpush1.msra.mxu0 %v107
    %1467 = vmatprep.subr.mxu0 %v115
    %1468 = vmatpush1.msra.mxu0 %v114
    %1469 = vmatprep.subr.mxu0 %v122
    %1470 = vmatpush1.msra.mxu0 %v121
    %1471 = vmatprep.subr.mxu0 %v129
    %1472 = vmatpush1.msra.mxu0 %v128
    %1473 = vmatprep.subr.mxu0 %v136
    %1474 = vmatpush1.msra.mxu0 %v135
    %1475 = vmatprep.subr.mxu0 %v143
    %1476 = vmatpush1.msra.mxu0 %v142
    %1477 = vmatprep.subr.mxu0 %v150
    %1478 = vmatpush1.msra.mxu0 %v149
    %1479 = vmatprep.subr.mxu0 %v157
    %1480 = vmatpush1.msra.mxu0 %v156
    %1481 = vmatprep.subr.mxu0 %v164
    %1482 = vmatpush1.msra.mxu0 %v163
    %1483 = vmatprep.subr.mxu0 %v171
    %1484 = vmatpush1.msra.mxu0 %v170
    %1485 = vmatprep.subr.mxu0 %v178
    %1486 = vmatpush1.msra.mxu0 %v177
    %1487 = vmatprep.subr.mxu0 %v185
    %1488 = vmatpush1.msra.mxu0 %v184
    %1489 = vmatprep.subr.mxu0 %v192
    %1490 = vmatpush1.msra.mxu0 %v191
    %1491 = vmatprep.subr.mxu0 %v199
    %1492 = vmatpush1.msra.mxu0 %v198
    %1493 = vmatprep.subr.mxu0 %v206
    %1494 = vmatpush1.msra.mxu0 %v205
    %1495 = vmatprep.subr.mxu0 %v213
    %1496 = vmatpush1.msra.mxu0 %v212
    %1497 = vmatprep.subr.mxu0 %v220
    %1498 = vmatpush1.msra.mxu0 %v219
    %1499 = vmatprep.subr.mxu0 %v227
    %1500 = vmatpush1.msra.mxu0 %v226
    %1501 = vmatprep.subr.mxu0 %v234
    %1502 = vmatpush1.msra.mxu0 %v233
    %1503 = vmatprep.subr.mxu0 %v241
    %1504 = vmatpush1.msra.mxu0 %v240
    %1505 = vmatprep.subr.mxu0 %v248
    %1506 = vmatpush1.msra.mxu0 %v247
    %1507 = vmatprep.subr.mxu0 %v255
    %1508 = vmatpush1.msra.mxu0 %v254
    %1509 = vmatprep.mubr.f32.mxu0 %v26
    %1510 = vmatmul.mubr.f32.gmra.mrb[0].mxu0 %v25
    %v1511 = vpop.f32.mrb[0].mxu0
    %v1512 = vadd.f32 0.0, %v1511
    %v1513 = vpop.f32.mrb[0].mxu0
    %v1514 = vadd.f32 0.0, %v1513
    %1515 = vdwg.mxu0
    %1516 = vmatprep.subr.mxu0 %v262
    %1517 = vmatpush1.msra.mxu0 %v261
    %1518 = vmatprep.subr.mxu0 %v269
    %1519 = vmatpush1.msra.mxu0 %v268
    %1520 = vmatprep.subr.mxu0 %v276
    %1521 = vmatpush1.msra.mxu0 %v275
    %1522 = vmatprep.subr.mxu0 %v283
    %1523 = vmatpush1.msra.mxu0 %v282
    %1524 = vmatprep.subr.mxu0 %v290
    %1525 = vmatpush1.msra.mxu0 %v289
    %1526 = vmatprep.subr.mxu0 %v297
    %1527 = vmatpush1.msra.mxu0 %v296
    %1528 = vmatprep.subr.mxu0 %v304
    %1529 = vmatpush1.msra.mxu0 %v303
    %1530 = vmatprep.subr.mxu0 %v311
    %1531 = vmatpush1.msra.mxu0 %v310
    %1532 = vmatprep.subr.mxu0 %v318
    %1533 = vmatpush1.msra.mxu0 %v317
    %1534 = vmatprep.subr.mxu0 %v325
    %1535 = vmatpush1.msra.mxu0 %v324
    %1536 = vmatprep.subr.mxu0 %v332
    %1537 = vmatpush1.msra.mxu0 %v331
    %1538 = vmatprep.subr.mxu0 %v339
    %1539 = vmatpush1.msra.mxu0 %v338
    %1540 = vmatprep.subr.mxu0 %v346
    %1541 = vmatpush1.msra.mxu0 %v345
    %1542 = vmatprep.subr.mxu0 %v353
    %1543 = vmatpush1.msra.mxu0 %v352
    %1544 = vmatprep.subr.mxu0 %v360
    %1545 = vmatpush1.msra.mxu0 %v359
    %1546 = vmatprep.subr.mxu0 %v367
    %1547 = vmatpush1.msra.mxu0 %v366
    %1548 = vmatprep.subr.mxu0 %v374
    %1549 = vmatpush1.msra.mxu0 %v373
    %1550 = vmatprep.subr.mxu0 %v381
    %1551 = vmatpush1.msra.mxu0 %v380
    %1552 = vmatprep.subr.mxu0 %v388
    %1553 = vmatpush1.msra.mxu0 %v387
    %1554 = vmatprep.subr.mxu0 %v395
    %1555 = vmatpush1.msra.mxu0 %v394
    %1556 = vmatprep.subr.mxu0 %v402
    %1557 = vmatpush1.msra.mxu0 %v401
    %1558 = vmatprep.subr.mxu0 %v409
    %1559 = vmatpush1.msra.mxu0 %v408
    %1560 = vmatprep.subr.mxu0 %v416
    %1561 = vmatpush1.msra.mxu0 %v415
    %1562 = vmatprep.subr.mxu0 %v423
    %1563 = vmatpush1.msra.mxu0 %v422
    %1564 = vmatprep.subr.mxu0 %v430
    %1565 = vmatpush1.msra.mxu0 %v429
    %1566 = vmatprep.subr.mxu0 %v437
    %1567 = vmatpush1.msra.mxu0 %v436
    %1568 = vmatprep.subr.mxu0 %v444
    %1569 = vmatpush1.msra.mxu0 %v443
    %1570 = vmatprep.subr.mxu0 %v451
    %1571 = vmatpush1.msra.mxu0 %v450
    %1572 = vmatprep.subr.mxu0 %v458
    %1573 = vmatpush1.msra.mxu0 %v457
    %1574 = vmatprep.subr.mxu0 %v465
    %1575 = vmatpush1.msra.mxu0 %v464
    %1576 = vmatprep.subr.mxu0 %v472
    %1577 = vmatpush1.msra.mxu0 %v471
    %1578 = vmatprep.subr.mxu0 %v479
    %1579 = vmatpush1.msra.mxu0 %v478
    %1580 = vmatprep.mubr.f32.mxu0 %v28
    %1581 = vmatmul.mubr.f32.gmra.mrb[0].mxu0 %v27
    %v1582 = vpop.f32.mrb[0].mxu0
    %v1583 = vadd.f32 %v1512, %v1582
    %v1584 = vpop.f32.mrb[0].mxu0
    %v1585 = vadd.f32 %v1514, %v1584
    %1586 = vdwg.mxu0
    %1587 = vmatprep.subr.mxu0 %v486
    %1588 = vmatpush1.msra.mxu0 %v485
    %1589 = vmatprep.subr.mxu0 %v493
    %1590 = vmatpush1.msra.mxu0 %v492
    %1591 = vmatprep.subr.mxu0 %v500
    %1592 = vmatpush1.msra.mxu0 %v499
    %1593 = vmatprep.subr.mxu0 %v507
    %1594 = vmatpush1.msra.mxu0 %v506
    %1595 = vmatprep.subr.mxu0 %v514
    %1596 = vmatpush1.msra.mxu0 %v513
    %1597 = vmatprep.subr.mxu0 %v521
    %1598 = vmatpush1.msra.mxu0 %v520
    %1599 = vmatprep.subr.mxu0 %v528
    %1600 = vmatpush1.msra.mxu0 %v527
    %1601 = vmatprep.subr.mxu0 %v535
    %1602 = vmatpush1.msra.mxu0 %v534
    %1603 = vmatprep.subr.mxu0 %v542
    %1604 = vmatpush1.msra.mxu0 %v541
    %1605 = vmatprep.subr.mxu0 %v549
    %1606 = vmatpush1.msra.mxu0 %v548
    %1607 = vmatprep.subr.mxu0 %v556
    %1608 = vmatpush1.msra.mxu0 %v555
    %1609 = vmatprep.subr.mxu0 %v563
    %1610 = vmatpush1.msra.mxu0 %v562
    %1611 = vmatprep.subr.mxu0 %v570
    %1612 = vmatpush1.msra.mxu0 %v569
    %1613 = vmatprep.subr.mxu0 %v577
    %1614 = vmatpush1.msra.mxu0 %v576
    %1615 = vmatprep.subr.mxu0 %v584
    %1616 = vmatpush1.msra.mxu0 %v583
    %1617 = vmatprep.subr.mxu0 %v591
    %1618 = vmatpush1.msra.mxu0 %v590
    %1619 = vmatprep.subr.mxu0 %v598
    %1620 = vmatpush1.msra.mxu0 %v597
    %1621 = vmatprep.subr.mxu0 %v605
    %1622 = vmatpush1.msra.mxu0 %v604
    %1623 = vmatprep.subr.mxu0 %v612
    %1624 = vmatpush1.msra.mxu0 %v611
    %1625 = vmatprep.subr.mxu0 %v619
    %1626 = vmatpush1.msra.mxu0 %v618
    %1627 = vmatprep.subr.mxu0 %v626
    %1628 = vmatpush1.msra.mxu0 %v625
    %1629 = vmatprep.subr.mxu0 %v633
    %1630 = vmatpush1.msra.mxu0 %v632
    %1631 = vmatprep.subr.mxu0 %v640
    %1632 = vmatpush1.msra.mxu0 %v639
    %1633 = vmatprep.subr.mxu0 %v647
    %1634 = vmatpush1.msra.mxu0 %v646
    %1635 = vmatprep.subr.mxu0 %v654
    %1636 = vmatpush1.msra.mxu0 %v653
    %1637 = vmatprep.subr.mxu0 %v661
    %1638 = vmatpush1.msra.mxu0 %v660
    %1639 = vmatprep.subr.mxu0 %v668
    %1640 = vmatpush1.msra.mxu0 %v667
    %1641 = vmatprep.subr.mxu0 %v675
    %1642 = vmatpush1.msra.mxu0 %v674
    %1643 = vmatprep.subr.mxu0 %v682
    %1644 = vmatpush1.msra.mxu0 %v681
    %1645 = vmatprep.subr.mxu0 %v689
    %1646 = vmatpush1.msra.mxu0 %v688
    %1647 = vmatprep.subr.mxu0 %v696
    %1648 = vmatpush1.msra.mxu0 %v695
    %1649 = vmatprep.subr.mxu0 %v703
    %1650 = vmatpush1.msra.mxu0 %v702
    %1651 = vmatprep.mubr.f32.mxu0 %v30
    %1652 = vmatmul.mubr.f32.gmra.mrb[0].mxu0 %v29
    %v1653 = vpop.f32.mrb[0].mxu0
    %v1654 = vadd.f32 %v1583, %v1653
    %v1655 = vpop.f32.mrb[0].mxu0
    %v1656 = vadd.f32 %v1585, %v1655
    %1657 = vdwg.mxu0
    %1658 = vmatprep.subr.mxu0 %v710
    %1659 = vmatpush1.msra.mxu0 %v709
    %1660 = vmatprep.subr.mxu0 %v717
    %1661 = vmatpush1.msra.mxu0 %v716
    %1662 = vmatprep.subr.mxu0 %v724
    %1663 = vmatpush1.msra.mxu0 %v723
    %1664 = vmatprep.subr.mxu0 %v731
    %1665 = vmatpush1.msra.mxu0 %v730
    %1666 = vmatprep.subr.mxu0 %v738
    %1667 = vmatpush1.msra.mxu0 %v737
    %1668 = vmatprep.subr.mxu0 %v745
    %1669 = vmatpush1.msra.mxu0 %v744
    %1670 = vmatprep.subr.mxu0 %v752
    %1671 = vmatpush1.msra.mxu0 %v751
    %1672 = vmatprep.subr.mxu0 %v759
    %1673 = vmatpush1.msra.mxu0 %v758
    %1674 = vmatprep.subr.mxu0 %v766
    %1675 = vmatpush1.msra.mxu0 %v765
    %1676 = vmatprep.subr.mxu0 %v773
    %1677 = vmatpush1.msra.mxu0 %v772
    %1678 = vmatprep.subr.mxu0 %v780
    %1679 = vmatpush1.msra.mxu0 %v779
    %1680 = vmatprep.subr.mxu0 %v787
    %1681 = vmatpush1.msra.mxu0 %v786
    %1682 = vmatprep.subr.mxu0 %v794
    %1683 = vmatpush1.msra.mxu0 %v793
    %1684 = vmatprep.subr.mxu0 %v801
    %1685 = vmatpush1.msra.mxu0 %v800
    %1686 = vmatprep.subr.mxu0 %v808
    %1687 = vmatpush1.msra.mxu0 %v807
    %1688 = vmatprep.subr.mxu0 %v815
    %1689 = vmatpush1.msra.mxu0 %v814
    %1690 = vmatprep.subr.mxu0 %v822
    %1691 = vmatpush1.msra.mxu0 %v821
    %1692 = vmatprep.subr.mxu0 %v829
    %1693 = vmatpush1.msra.mxu0 %v828
    %1694 = vmatprep.subr.mxu0 %v836
    %1695 = vmatpush1.msra.mxu0 %v835
    %1696 = vmatprep.subr.mxu0 %v843
    %1697 = vmatpush1.msra.mxu0 %v842
    %1698 = vmatprep.subr.mxu0 %v850
    %1699 = vmatpush1.msra.mxu0 %v849
    %1700 = vmatprep.subr.mxu0 %v857
    %1701 = vmatpush1.msra.mxu0 %v856
    %1702 = vmatprep.subr.mxu0 %v864
    %1703 = vmatpush1.msra.mxu0 %v863
    %1704 = vmatprep.subr.mxu0 %v871
    %1705 = vmatpush1.msra.mxu0 %v870
    %1706 = vmatprep.subr.mxu0 0.0
    %1707 = vmatpush1.msra.mxu0 0.0
    %1708 = vmatprep.subr.mxu0 0.0
    %1709 = vmatpush1.msra.mxu0 0.0
    %1710 = vmatprep.subr.mxu0 0.0
    %1711 = vmatpush1.msra.mxu0 0.0
    %1712 = vmatprep.subr.mxu0 0.0
    %1713 = vmatpush1.msra.mxu0 0.0
    %1714 = vmatprep.subr.mxu0 0.0
    %1715 = vmatpush1.msra.mxu0 0.0
    %1716 = vmatprep.subr.mxu0 0.0
    %1717 = vmatpush1.msra.mxu0 0.0
    %1718 = vmatprep.subr.mxu0 0.0
    %1719 = vmatpush1.msra.mxu0 0.0
    %1720 = vmatprep.subr.mxu0 0.0
    %1721 = vmatpush1.msra.mxu0 0.0
    %1722 = vmatprep.mubr.f32.mxu0 %v875
    %1723 = vmatmul.mubr.f32.gmra.mrb[0].mxu0 %v31
    %v1724 = vpop.f32.mrb[0].mxu0
    %v1725 = vadd.f32 %v1654, %v1724
    %v1726 = vpop.f32.mrb[0].mxu0
    %v1727 = vadd.f32 %v1656, %v1726
    %1728 = vdwg.mxu0
    %1729 = vmatprep.subr.mxu0 0.0
    %1730 = vmatpush1.msra.mxu0 %v39
    %1731 = vmatprep.subr.mxu0 0.0
    %1732 = vmatpush1.msra.mxu0 %v46
    %1733 = vmatprep.subr.mxu0 0.0
    %1734 = vmatpush1.msra.mxu0 %v53
    %1735 = vmatprep.subr.mxu0 0.0
    %1736 = vmatpush1.msra.mxu0 %v60
    %1737 = vmatprep.subr.mxu0 0.0
    %1738 = vmatpush1.msra.mxu0 %v67
    %1739 = vmatprep.subr.mxu0 0.0
    %1740 = vmatpush1.msra.mxu0 %v74
    %1741 = vmatprep.subr.mxu0 0.0
    %1742 = vmatpush1.msra.mxu0 %v81
    %1743 = vmatprep.subr.mxu0 0.0
    %1744 = vmatpush1.msra.mxu0 %v88
    %1745 = vmatprep.subr.mxu0 0.0
    %1746 = vmatpush1.msra.mxu0 %v95
    %1747 = vmatprep.subr.mxu0 0.0
    %1748 = vmatpush1.msra.mxu0 %v102
    %1749 = vmatprep.subr.mxu0 0.0
    %1750 = vmatpush1.msra.mxu0 %v109
    %1751 = vmatprep.subr.mxu0 0.0
    %1752 = vmatpush1.msra.mxu0 %v116
    %1753 = vmatprep.subr.mxu0 0.0
    %1754 = vmatpush1.msra.mxu0 %v123
    %1755 = vmatprep.subr.mxu0 0.0
    %1756 = vmatpush1.msra.mxu0 %v130
    %1757 = vmatprep.subr.mxu0 0.0
    %1758 = vmatpush1.msra.mxu0 %v137
    %1759 = vmatprep.subr.mxu0 0.0
    %1760 = vmatpush1.msra.mxu0 %v144
    %1761 = vmatprep.subr.mxu0 0.0
    %1762 = vmatpush1.msra.mxu0 %v151
    %1763 = vmatprep.subr.mxu0 0.0
    %1764 = vmatpush1.msra.mxu0 %v158
    %1765 = vmatprep.subr.mxu0 0.0
    %1766 = vmatpush1.msra.mxu0 %v165
    %1767 = vmatprep.subr.mxu0 0.0
    %1768 = vmatpush1.msra.mxu0 %v172
    %1769 = vmatprep.subr.mxu0 0.0
    %1770 = vmatpush1.msra.mxu0 %v179
    %1771 = vmatprep.subr.mxu0 0.0
    %1772 = vmatpush1.msra.mxu0 %v186
    %1773 = vmatprep.subr.mxu0 0.0
    %1774 = vmatpush1.msra.mxu0 %v193
    %1775 = vmatprep.subr.mxu0 0.0
    %1776 = vmatpush1.msra.mxu0 %v200
    %1777 = vmatprep.subr.mxu0 0.0
    %1778 = vmatpush1.msra.mxu0 %v207
    %1779 = vmatprep.subr.mxu0 0.0
    %1780 = vmatpush1.msra.mxu0 %v214
    %1781 = vmatprep.subr.mxu0 0.0
    %1782 = vmatpush1.msra.mxu0 %v221
    %1783 = vmatprep.subr.mxu0 0.0
    %1784 = vmatpush1.msra.mxu0 %v228
    %1785 = vmatprep.subr.mxu0 0.0
    %1786 = vmatpush1.msra.mxu0 %v235
    %1787 = vmatprep.subr.mxu0 0.0
    %1788 = vmatpush1.msra.mxu0 %v242
    %1789 = vmatprep.subr.mxu0 0.0
    %1790 = vmatpush1.msra.mxu0 %v249
    %1791 = vmatprep.subr.mxu0 0.0
    %1792 = vmatpush1.msra.mxu0 %v256
    %1793 = vmatprep.mubr.f32.mxu0 %v26
    %1794 = vmatmul.mubr.f32.gmra.mrb[0].mxu0 %v25
    %v1795 = vpop.f32.mrb[0].mxu0
    %v1796 = vadd.f32 0.0, %v1795
    %v1797 = vpop.f32.mrb[0].mxu0
    %1798 = vdwg.mxu0
    %1799 = vmatprep.subr.mxu0 0.0
    %1800 = vmatpush1.msra.mxu0 %v263
    %1801 = vmatprep.subr.mxu0 0.0
    %1802 = vmatpush1.msra.mxu0 %v270
    %1803 = vmatprep.subr.mxu0 0.0
    %1804 = vmatpush1.msra.mxu0 %v277
    %1805 = vmatprep.subr.mxu0 0.0
    %1806 = vmatpush1.msra.mxu0 %v284
    %1807 = vmatprep.subr.mxu0 0.0
    %1808 = vmatpush1.msra.mxu0 %v291
    %1809 = vmatprep.subr.mxu0 0.0
    %1810 = vmatpush1.msra.mxu0 %v298
    %1811 = vmatprep.subr.mxu0 0.0
    %1812 = vmatpush1.msra.mxu0 %v305
    %1813 = vmatprep.subr.mxu0 0.0
    %1814 = vmatpush1.msra.mxu0 %v312
    %1815 = vmatprep.subr.mxu0 0.0
    %1816 = vmatpush1.msra.mxu0 %v319
    %1817 = vmatprep.subr.mxu0 0.0
    %1818 = vmatpush1.msra.mxu0 %v326
    %1819 = vmatprep.subr.mxu0 0.0
    %1820 = vmatpush1.msra.mxu0 %v333
    %1821 = vmatprep.subr.mxu0 0.0
    %1822 = vmatpush1.msra.mxu0 %v340
    %1823 = vmatprep.subr.mxu0 0.0
    %1824 = vmatpush1.msra.mxu0 %v347
    %1825 = vmatprep.subr.mxu0 0.0
    %1826 = vmatpush1.msra.mxu0 %v354
    %1827 = vmatprep.subr.mxu0 0.0
    %1828 = vmatpush1.msra.mxu0 %v361
    %1829 = vmatprep.subr.mxu0 0.0
    %1830 = vmatpush1.msra.mxu0 %v368
    %1831 = vmatprep.subr.mxu0 0.0
    %1832 = vmatpush1.msra.mxu0 %v375
    %1833 = vmatprep.subr.mxu0 0.0
    %1834 = vmatpush1.msra.mxu0 %v382
    %1835 = vmatprep.subr.mxu0 0.0
    %1836 = vmatpush1.msra.mxu0 %v389
    %1837 = vmatprep.subr.mxu0 0.0
    %1838 = vmatpush1.msra.mxu0 %v396
    %1839 = vmatprep.subr.mxu0 0.0
    %1840 = vmatpush1.msra.mxu0 %v403
    %1841 = vmatprep.subr.mxu0 0.0
    %1842 = vmatpush1.msra.mxu0 %v410
    %1843 = vmatprep.subr.mxu0 0.0
    %1844 = vmatpush1.msra.mxu0 %v417
    %1845 = vmatprep.subr.mxu0 0.0
    %1846 = vmatpush1.msra.mxu0 %v424
    %1847 = vmatprep.subr.mxu0 0.0
    %1848 = vmatpush1.msra.mxu0 %v431
    %1849 = vmatprep.subr.mxu0 0.0
    %1850 = vmatpush1.msra.mxu0 %v438
    %1851 = vmatprep.subr.mxu0 0.0
    %1852 = vmatpush1.msra.mxu0 %v445
    %1853 = vmatprep.subr.mxu0 0.0
    %1854 = vmatpush1.msra.mxu0 %v452
    %1855 = vmatprep.subr.mxu0 0.0
    %1856 = vmatpush1.msra.mxu0 %v459
    %1857 = vmatprep.subr.mxu0 0.0
    %1858 = vmatpush1.msra.mxu0 %v466
    %1859 = vmatprep.subr.mxu0 0.0
    %1860 = vmatpush1.msra.mxu0 %v473
    %1861 = vmatprep.subr.mxu0 0.0
    %1862 = vmatpush1.msra.mxu0 %v480
    %1863 = vmatprep.mubr.f32.mxu0 %v28
    %1864 = vmatmul.mubr.f32.gmra.mrb[0].mxu0 %v27
    %v1865 = vpop.f32.mrb[0].mxu0
    %v1866 = vadd.f32 %v1796, %v1865
    %v1867 = vpop.f32.mrb[0].mxu0
    %1868 = vdwg.mxu0
    %1869 = vmatprep.subr.mxu0 0.0
    %1870 = vmatpush1.msra.mxu0 %v487
    %1871 = vmatprep.subr.mxu0 0.0
    %1872 = vmatpush1.msra.mxu0 %v494
    %1873 = vmatprep.subr.mxu0 0.0
    %1874 = vmatpush1.msra.mxu0 %v501
    %1875 = vmatprep.subr.mxu0 0.0
    %1876 = vmatpush1.msra.mxu0 %v508
    %1877 = vmatprep.subr.mxu0 0.0
    %1878 = vmatpush1.msra.mxu0 %v515
    %1879 = vmatprep.subr.mxu0 0.0
    %1880 = vmatpush1.msra.mxu0 %v522
    %1881 = vmatprep.subr.mxu0 0.0
    %1882 = vmatpush1.msra.mxu0 %v529
    %1883 = vmatprep.subr.mxu0 0.0
    %1884 = vmatpush1.msra.mxu0 %v536
    %1885 = vmatprep.subr.mxu0 0.0
    %1886 = vmatpush1.msra.mxu0 %v543
    %1887 = vmatprep.subr.mxu0 0.0
    %1888 = vmatpush1.msra.mxu0 %v550
    %1889 = vmatprep.subr.mxu0 0.0
    %1890 = vmatpush1.msra.mxu0 %v557
    %1891 = vmatprep.subr.mxu0 0.0
    %1892 = vmatpush1.msra.mxu0 %v564
    %1893 = vmatprep.subr.mxu0 0.0
    %1894 = vmatpush1.msra.mxu0 %v571
    %1895 = vmatprep.subr.mxu0 0.0
    %1896 = vmatpush1.msra.mxu0 %v578
    %1897 = vmatprep.subr.mxu0 0.0
    %1898 = vmatpush1.msra.mxu0 %v585
    %1899 = vmatprep.subr.mxu0 0.0
    %1900 = vmatpush1.msra.mxu0 %v592
    %1901 = vmatprep.subr.mxu0 0.0
    %1902 = vmatpush1.msra.mxu0 %v599
    %1903 = vmatprep.subr.mxu0 0.0
    %1904 = vmatpush1.msra.mxu0 %v606
    %1905 = vmatprep.subr.mxu0 0.0
    %1906 = vmatpush1.msra.mxu0 %v613
    %1907 = vmatprep.subr.mxu0 0.0
    %1908 = vmatpush1.msra.mxu0 %v620
    %1909 = vmatprep.subr.mxu0 0.0
    %1910 = vmatpush1.msra.mxu0 %v627
    %1911 = vmatprep.subr.mxu0 0.0
    %1912 = vmatpush1.msra.mxu0 %v634
    %1913 = vmatprep.subr.mxu0 0.0
    %1914 = vmatpush1.msra.mxu0 %v641
    %1915 = vmatprep.subr.mxu0 0.0
    %1916 = vmatpush1.msra.mxu0 %v648
    %1917 = vmatprep.subr.mxu0 0.0
    %1918 = vmatpush1.msra.mxu0 %v655
    %1919 = vmatprep.subr.mxu0 0.0
    %1920 = vmatpush1.msra.mxu0 %v662
    %1921 = vmatprep.subr.mxu0 0.0
    %1922 = vmatpush1.msra.mxu0 %v669
    %1923 = vmatprep.subr.mxu0 0.0
    %1924 = vmatpush1.msra.mxu0 %v676
    %1925 = vmatprep.subr.mxu0 0.0
    %1926 = vmatpush1.msra.mxu0 %v683
    %1927 = vmatprep.subr.mxu0 0.0
    %1928 = vmatpush1.msra.mxu0 %v690
    %1929 = vmatprep.subr.mxu0 0.0
    %1930 = vmatpush1.msra.mxu0 %v697
    %1931 = vmatprep.subr.mxu0 0.0
    %1932 = vmatpush1.msra.mxu0 %v704
    %1933 = vmatprep.mubr.f32.mxu0 %v30
    %1934 = vmatmul.mubr.f32.gmra.mrb[0].mxu0 %v29
    %v1935 = vpop.f32.mrb[0].mxu0
    %v1936 = vadd.f32 %v1866, %v1935
    %v1937 = vpop.f32.mrb[0].mxu0
    %1938 = vdwg.mxu0
    %1939 = vmatprep.subr.mxu0 0.0
    %1940 = vmatpush1.msra.mxu0 %v711
    %1941 = vmatprep.subr.mxu0 0.0
    %1942 = vmatpush1.msra.mxu0 %v718
    %1943 = vmatprep.subr.mxu0 0.0
    %1944 = vmatpush1.msra.mxu0 %v725
    %1945 = vmatprep.subr.mxu0 0.0
    %1946 = vmatpush1.msra.mxu0 %v732
    %1947 = vmatprep.subr.mxu0 0.0
    %1948 = vmatpush1.msra.mxu0 %v739
    %1949 = vmatprep.subr.mxu0 0.0
    %1950 = vmatpush1.msra.mxu0 %v746
    %1951 = vmatprep.subr.mxu0 0.0
    %1952 = vmatpush1.msra.mxu0 %v753
    %1953 = vmatprep.subr.mxu0 0.0
    %1954 = vmatpush1.msra.mxu0 %v760
    %1955 = vmatprep.subr.mxu0 0.0
    %1956 = vmatpush1.msra.mxu0 %v767
    %1957 = vmatprep.subr.mxu0 0.0
    %1958 = vmatpush1.msra.mxu0 %v774
    %1959 = vmatprep.subr.mxu0 0.0
    %1960 = vmatpush1.msra.mxu0 %v781
    %1961 = vmatprep.subr.mxu0 0.0
    %1962 = vmatpush1.msra.mxu0 %v788
    %1963 = vmatprep.subr.mxu0 0.0
    %1964 = vmatpush1.msra.mxu0 %v795
    %1965 = vmatprep.subr.mxu0 0.0
    %1966 = vmatpush1.msra.mxu0 %v802
    %1967 = vmatprep.subr.mxu0 0.0
    %1968 = vmatpush1.msra.mxu0 %v809
    %1969 = vmatprep.subr.mxu0 0.0
    %1970 = vmatpush1.msra.mxu0 %v816
    %1971 = vmatprep.subr.mxu0 0.0
    %1972 = vmatpush1.msra.mxu0 %v823
    %1973 = vmatprep.subr.mxu0 0.0
    %1974 = vmatpush1.msra.mxu0 %v830
    %1975 = vmatprep.subr.mxu0 0.0
    %1976 = vmatpush1.msra.mxu0 %v837
    %1977 = vmatprep.subr.mxu0 0.0
    %1978 = vmatpush1.msra.mxu0 %v844
    %1979 = vmatprep.subr.mxu0 0.0
    %1980 = vmatpush1.msra.mxu0 %v851
    %1981 = vmatprep.subr.mxu0 0.0
    %1982 = vmatpush1.msra.mxu0 %v858
    %1983 = vmatprep.subr.mxu0 0.0
    %1984 = vmatpush1.msra.mxu0 %v865
    %1985 = vmatprep.subr.mxu0 0.0
    %1986 = vmatpush1.msra.mxu0 %v872
    %1987 = vmatprep.subr.mxu0 0.0
    %1988 = vmatpush1.msra.mxu0 0.0
    %1989 = vmatprep.subr.mxu0 0.0
    %1990 = vmatpush1.msra.mxu0 0.0
    %1991 = vmatprep.subr.mxu0 0.0
    %1992 = vmatpush1.msra.mxu0 0.0
    %1993 = vmatprep.subr.mxu0 0.0
    %1994 = vmatpush1.msra.mxu0 0.0
    %1995 = vmatprep.subr.mxu0 0.0
    %1996 = vmatpush1.msra.mxu0 0.0
    %1997 = vmatprep.subr.mxu0 0.0
    %1998 = vmatpush1.msra.mxu0 0.0
    %1999 = vmatprep.subr.mxu0 0.0
    %2000 = vmatpush1.msra.mxu0 0.0
    %2001 = vmatprep.subr.mxu0 0.0
    %2002 = vmatpush1.msra.mxu0 0.0
    %2003 = vmatprep.mubr.f32.mxu0 %v875
    %2004 = vmatmul.mubr.f32.gmra.mrb[0].mxu0 %v31
    %v2005 = vpop.f32.mrb[0].mxu0
    %v2006 = vadd.f32 %v1936, %v2005
    %v2007 = vpop.f32.mrb[0].mxu0
    %2008 = vdwg.mxu0
    %v2009 = vmul.f32 %v1157, 0.5
    %v2010 = vmul.f32 %v1159, 0.5
    %v2011 = vmul.f32 %v1441, 0.5
    %v2012 = vmul.f32 %v1443, 0.5
    %v2013 = vmul.f32 %v1725, 0.5
    %v2014 = vmul.f32 %v1727, 0.5
    %v2015 = vmul.f32 %v2006, 0.5
    %v2016 = vmul.f32 %v1157, 0.044715
    %v2017 = vmul.f32 %v1159, 0.044715
    %v2018 = vmul.f32 %v1441, 0.044715
    %v2019 = vmul.f32 %v1443, 0.044715
    %v2020 = vmul.f32 %v1725, 0.044715
    %v2021 = vmul.f32 %v1727, 0.044715
    %v2022 = vmul.f32 %v2006, 0.044715
    %v2023 = vmul.f32 %v2016, %v1157
    %v2024 = vmul.f32 %v2017, %v1159
    %v2025 = vmul.f32 %v2018, %v1441
    %v2026 = vmul.f32 %v2019, %v1443
    %v2027 = vmul.f32 %v2020, %v1725
    %v2028 = vmul.f32 %v2021, %v1727
    %v2029 = vmul.f32 %v2022, %v2006
    %v2030 = vmul.f32 %v2023, %v1157
    %v2031 = vmul.f32 %v2024, %v1159
    %v2032 = vmul.f32 %v2025, %v1441
    %v2033 = vmul.f32 %v2026, %v1443
    %v2034 = vmul.f32 %v2027, %v1725
    %v2035 = vmul.f32 %v2028, %v1727
    %v2036 = vmul.f32 %v2029, %v2006
    %v2037 = vadd.f32 %v1157, %v2030
    %v2038 = vadd.f32 %v1159, %v2031
    %v2039 = vadd.f32 %v1441, %v2032
    %v2040 = vadd.f32 %v1443, %v2033
    %v2041 = vadd.f32 %v1725, %v2034
    %v2042 = vadd.f32 %v1727, %v2035
    %v2043 = vadd.f32 %v2006, %v2036
    %v2044 = vmul.f32 %v2037, 0.7978846
    %v2045 = vmul.f32 %v2038, 0.7978846
    %v2046 = vmul.f32 %v2039, 0.7978846
    %v2047 = vmul.f32 %v2040, 0.7978846
    %v2048 = vmul.f32 %v2041, 0.7978846
    %v2049 = vmul.f32 %v2042, 0.7978846
    %v2050 = vmul.f32 %v2043, 0.7978846
    %v2051 = vtanh.pop %v2044
    %v2052 = vtanh.pop %v2045
    %v2053 = vtanh.pop %v2046
    %v2054 = vtanh.pop %v2047
    %v2055 = vtanh.pop %v2048
    %v2056 = vtanh.pop %v2049
    %v2057 = vtanh.pop %v2050
    %v2058 = vadd.f32 %v2051, 1.0
    %v2059 = vadd.f32 %v2052, 1.0
    %v2060 = vadd.f32 %v2053, 1.0
    %v2061 = vadd.f32 %v2054, 1.0
    %v2062 = vadd.f32 %v2055, 1.0
    %v2063 = vadd.f32 %v2056, 1.0
    %v2064 = vadd.f32 %v2057, 1.0
    %v2065 = vmul.f32 %v2009, %v2058
    %v2066 = vmul.f32 %v2010, %v2059
    %v2067 = vmul.f32 %v2011, %v2060
    %v2068 = vmul.f32 %v2012, %v2061
    %v2069 = vmul.f32 %v2013, %v2062
    %v2070 = vmul.f32 %v2014, %v2063
    %v2071 = vmul.f32 %v2015, %v2064
    %v2079 = vrot.slane %v2065, 2
    %v2080 = vrot.slane %v2066, 2
    %v2081 = vrot.slane %v2067, 2
    %v2082 = vrot.slane %v2068, 2
    %v2083 = vrot.slane %v2069, 2
    %v2084 = vrot.slane %v2070, 2
    %v2085 = vrot.slane %v2071, 2
    %v2093 = vadd.f32 %v2065, %v2079
    %v2094 = vadd.f32 %v2066, %v2080
    %v2095 = vadd.f32 %v2067, %v2081
    %v2096 = vadd.f32 %v2068, %v2082
    %v2097 = vadd.f32 %v2069, %v2083
    %v2098 = vadd.f32 %v2070, %v2084
    %v2099 = vadd.f32 %v2071, %v2085
    %v2100 = vmul.f32 %v2093, 0.7978846
    %v2101 = vmul.f32 %v2094, 0.7978846
    %v2102 = vmul.f32 %v2095, 0.7978846
    %v2103 = vmul.f32 %v2096, 0.7978846
    %v2104 = vmul.f32 %v2097, 0.7978846
    %v2105 = vmul.f32 %v2098, 0.7978846
    %v2106 = vmul.f32 %v2099, 0.7978846
    %v2107 = vtanh.pop %v2100
    %v2108 = vtanh.pop %v2101
    %v2109 = vtanh.pop %v2102
    %v2110 = vtanh.pop %v2103
    %v2111 = vtanh.pop %v2104
    %v2112 = vtanh.pop %v2105
    %v2113 = vtanh.pop %v2106
    %v2114 = vadd.f32 %v2107, 1.0
    %v2115 = vadd.f32 %v2108, 1.0
    %v2116 = vadd.f32 %v2109, 1.0
    %v2117 = vadd.f32 %v2110, 1.0
    %v2118 = vadd.f32 %v2111, 1.0
    %v2119 = vadd.f32 %v2112, 1.0
    %v2120 = vadd.f32 %v2113, 1.0
    %v2128 = vrot.slane %v2114, 4
    %v2129 = vrot.slane %v2115, 4
    %v2130 = vrot.slane %v2116, 4
    %v2131 = vrot.slane %v2117, 4
    %v2132 = vrot.slane %v2118, 4
    %v2133 = vrot.slane %v2119, 4
    %v2134 = vrot.slane %v2120, 4
    %v2142 = vadd.f32 %v2065, %v2128
    %v2143 = vadd.f32 %v2066, %v2129
    %v2144 = vadd.f32 %v2067, %v2130
    %v2145 = vadd.f32 %v2068, %v2131
    %v2146 = vadd.f32 %v2069, %v2132
    %v2147 = vadd.f32 %v2070, %v2133
    %v2148 = vadd.f32 %v2071, %v2134
    %v2149 = vmul.f32 %v2142, 0.7978846
    %v2150 = vmul.f32 %v2143, 0.7978846
    %v2151 = vmul.f32 %v2144, 0.7978846
    %v2152 = vmul.f32 %v2145, 0.7978846
    %v2153 = vmul.f32 %v2146, 0.7978846
    %v2154 = vmul.f32 %v2147, 0.7978846
    %v2155 = vmul.f32 %v2148, 0.7978846
    %v2156 = vtanh.pop %v2149
    %v2157 = vtanh.pop %v2150
    %v2158 = vtanh.pop %v2151
    %v2159 = vtanh.pop %v2152
    %v2160 = vtanh.pop %v2153
    %v2161 = vtanh.pop %v2154
    %v2162 = vtanh.pop %v2155
    %v2163 = vadd.f32 %v2156, 1.0
    %v2164 = vadd.f32 %v2157, 1.0
    %v2165 = vadd.f32 %v2158, 1.0
    %v2166 = vadd.f32 %v2159, 1.0
    %v2167 = vadd.f32 %v2160, 1.0
    %v2168 = vadd.f32 %v2161, 1.0
    %v2169 = vadd.f32 %v2162, 1.0
    %v2177 = vrot.slane %v2163, 4
    %v2178 = vrot.slane %v2164, 4
    %v2179 = vrot.slane %v2165, 4
    %v2180 = vrot.slane %v2166, 4
    %v2181 = vrot.slane %v2167, 4
    %v2182 = vrot.slane %v2168, 4
    %v2183 = vrot.slane %v2169, 4
    %v2191 = vmul.f32 %v2009, %v2177
    %v2192 = vmul.f32 %v2010, %v2178
    %v2193 = vmul.f32 %v2011, %v2179
    %v2194 = vmul.f32 %v2012, %v2180
    %v2195 = vmul.f32 %v2013, %v2181
    %v2196 = vmul.f32 %v2014, %v2182
    %v2197 = vmul.f32 %v2015, %v2183
    %v2205 = vcombine.low %v2191, %v2192
    %v2206 = vcombine.low %v2193, %v2194
    %v2208 = vunpack.c.l.s4 1983009808
    %v2209 = vunpack.c.0.s8 %v2208
    %v2210 = vlaneseq
    %v2211 = vshrl.u32 %v2210, 7
    %v2212 = vsub.s32 %v2209, %v2211
    %v2213 = vrot.slane %v2205, %v2212
    %v2215 = vunpack.c.l.s4 1983009808
    %v2216 = vunpack.c.0.s8 %v2215
    %v2217 = vlaneseq
    %v2218 = vshrl.u32 %v2217, 7
    %v2219 = vsub.s32 %v2216, %v2218
    %v2220 = vrot.slane %v2206, %v2219
    %v2221 = vcombine.low %v2213, %v2220
    %v2222 = vcombine.low %v2195, %v2196
    %v2224 = vunpack.c.l.s4 1983009808
    %v2225 = vunpack.c.0.s8 %v2224
    %v2226 = vlaneseq
    %v2227 = vshrl.u32 %v2226, 7
    %v2228 = vsub.s32 %v2225, %v2227
    %v2229 = vrot.slane %v2222, %v2228
    %v2231 = vunpack.c.l.s4 1983009808
    %v2232 = vunpack.c.0.s8 %v2231
    %v2233 = vlaneseq
    %v2234 = vshrl.u32 %v2233, 7
    %v2235 = vsub.s32 %v2232, %v2234
    %v2236 = vrot.slane %v2197, %v2235
    %v2237 = vcombine.low %v2229, %v2236
    %2240 = vst [vmem:[%s2] sm:$0xff] %v2221
    %2241 = vst [vmem:[%s2 + $0x8] sm:$0x3f] %v2237
    // Predicated region
    $region14: #{a_call__.1} parent=1 // pred_check
      _
    $region15: #{a_call__.1} parent=1 // pred_check_branch
      %2243 = sbr.rel (0) target = $region17
    $region16: #{a_call__.1} parent=1 // pred_region
      _
    $region17: #{a_call__.1} parent=1 // pred_fallthru
      _
    // Predicated region
    $region18: #{a_call__.1} parent=1 // pred_check
      _
    $region19: #{a_call__.1} parent=1 // pred_check_branch
      %2245 = sbr.rel (0) target = $region21
    $region20: #{a_call__.1} parent=1 // pred_region
      _
    $region21: #{a_call__.1} parent=1 // pred_fallthru
      _
    %2246 = vsyncpa [#allocation3], 1

</llo_original>
